<compile_context>
chip_gen: v5e
topology: v5e:2x2
jax: 0.10.0
libtpu: 0.0.40
codegen_flags: <defaults>
</compile_context>

<pallas_src>
import functools
import math

import jax
import jax.numpy as jnp
from jax.experimental import pallas as pl
from jax.experimental.pallas import tpu as pltpu


# ---------------------------------------------------------------------------
# helpers
# ---------------------------------------------------------------------------

_NUM_VEC_ROWS = 10  # bq bk bv bo ln1g ln1b ln2g ln2b b2 b1


def _tpu_vmem_bytes():
    """Per-core VMEM capacity; conservative 64 MiB (v7x floor) if unknown."""
    try:
        cap = getattr(pltpu.get_tpu_info(), "vmem_capacity_bytes", None)
        if cap:
            return int(cap)
    except Exception:
        pass
    return 64 * 1024 * 1024


def _reduction_tile(total, target=4096, quantum=128):
    """Largest multiple of `quantum` dividing `total` and <= target, else total."""
    best = None
    t = quantum
    lim = min(total, target)
    while t <= lim:
        if total % t == 0:
            best = t
        t += quantum
    return best if best is not None else total


def _layer_norm(x, g, b, eps=1e-5):
    # two-pass statistics: robust when residual magnitudes grow with depth
    m = jnp.mean(x, axis=-1, keepdims=True)
    c = x - m
    var = jnp.mean(c * c, axis=-1, keepdims=True)
    return c * jax.lax.rsqrt(var + eps) * g + b


def _spec_maybe_buffered(shape, index_map, depth):
    """BlockSpec with a deeper DMA pipeline when this jax version supports it."""
    try:
        return pl.BlockSpec(shape, index_map, pipeline_mode=pl.Buffered(depth))
    except Exception:
        return pl.BlockSpec(shape, index_map)


def _encoder_plan(N, S, D, F, L, nv, vm, *, tile_n=None, force_streamed=False):
    """Pick (weights_resident, tile_n, vmem_limit_bytes) from the VMEM budget.

    With the layer axis streamed, weight HBM traffic is num_tiles * all_weights,
    so we prefer (a) holding the whole weight stack VMEM-resident and (b) the
    largest activation tile that fits.  On ~64 MiB parts (v7x) keep >= 2 tiles so
    the "parallel" tile axis can shard across both TensorCores.
    """
    cap = _tpu_vmem_bytes()
    budget = int(cap * 0.75)
    vmem_limit = int(cap * 0.82)          # ~105 MiB on 128 MiB parts, ~52 MiB on v7x

    w_layer = (D * 3 * D + D * D + D * F + F * D) * 2 + nv * vm * 4   # bf16 mats + f32 vec
    w_all = L * w_layer

    def act_bytes(t):
        io = 2 * 2 * t * S * D * 4                      # in + out blocks, double-buffered
        inter = t * S * (8 * D + 2 * F + 4 * S) * 4     # rough f32 intermediate live set
        return io + inter

    def fits(t, resident):
        w = 2 * (w_all if resident else w_layer)        # conservative: 2x pipeline buffers
        return act_bytes(t) + w <= budget

    divs = [d for d in range(1, N + 1) if N % d == 0]
    resident = (not force_streamed) and fits(1, True)
    cand = [d for d in divs if fits(d, resident)] or [1]
    best = max(cand)
    if cap <= 80 * 1024 * 1024 and N >= 2:
        halves = [d for d in cand if d <= N // 2] or [d for d in divs if d <= N // 2]
        best = max(halves)
    if tile_n is not None:
        assert N % tile_n == 0, (N, tile_n)
        best = tile_n
    return resident, best, vmem_limit


# ---------------------------------------------------------------------------
# per-layer encoder math (shared by both encoder kernels)
# ---------------------------------------------------------------------------

def _encoder_layer_compute(x2d, T, S, n_heads, d_ff, wqkv, wo, w1, w2, vec):
    """One norm_first TransformerEncoderLayer on a flattened (T*S, D) stream.

    wqkv/wo/w1/w2 are bf16 values already loaded from VMEM; `vec` packs the 10
    small f32 per-layer vectors (biases + LayerNorm affine), one per row.
    """
    f32, bf16 = jnp.float32, jnp.bfloat16
    D = x2d.shape[-1]
    hd = D // n_heads

    bq, bk, bv = vec[0:1, :D], vec[1:2, :D], vec[2:3, :D]
    bo = vec[3:4, :D]
    ln1g, ln1b = vec[4:5, :D], vec[5:6, :D]
    ln2g, ln2b = vec[6:7, :D], vec[7:8, :D]
    b2 = vec[8:9, :D]
    b1 = vec[9:10, :d_ff]

    # ---- self-attention block: x += out_proj(MHA(LN1(x))) ----
    h = _layer_norm(x2d, ln1g, ln1b).astype(bf16)
    # Fused Q|K|V projection: single MXU pass with a 3*D-wide N dim.
    qkv = jnp.dot(h, wqkv, preferred_element_type=f32)
    q = (qkv[:, :D] + bq).reshape(T, S, D)          # 1/sqrt(hd) pre-folded into wq / bq
    k = (qkv[:, D:2 * D] + bk).reshape(T, S, D)
    v = (qkv[:, 2 * D:] + bv).reshape(T, S, D)

    # TODO(synk): a fully head-batched (T*H, S, hd) attention would remove the lane
    # concat, but multi-batch-dim dot_general / (0,2,1,3) transposes do not lower
    # reliably in Mosaic; per-head 3-D single-batch-dim einsums are the safe form.
    ctx = []
    for hh in range(n_heads):
        sl = slice(hh * hd, (hh + 1) * hd)
        qh = q[:, :, sl].astype(bf16)
        kh = k[:, :, sl].astype(bf16)
        vh = v[:, :, sl].astype(bf16)
        s = jnp.einsum('bqd,bkd->bqk', qh, kh, preferred_element_type=f32)
        s = s - jnp.max(s, axis=-1, keepdims=True)
        p = jnp.exp(s)
        p = p * pl.reciprocal(jnp.sum(p, axis=-1, keepdims=True), approx=False)
        ctx.append(jnp.einsum('bqk,bkd->bqd', p.astype(bf16), vh,
                              preferred_element_type=f32))
    ctx = jnp.concatenate(ctx, axis=-1).reshape(T * S, D)
    x2d = x2d + jnp.dot(ctx.astype(bf16), wo, preferred_element_type=f32) + bo

    # ---- feed-forward block: x += W2 relu(W1 LN2(x) + b1) + b2 ----
    h2 = _layer_norm(x2d, ln2g, ln2b).astype(bf16)
    ff = jnp.dot(h2, w1, preferred_element_type=f32) + b1
    ff = jnp.maximum(ff, 0.0).astype(bf16)          # drop the F-wide f32 intermediate early
    ff = jnp.dot(ff, w2, preferred_element_type=f32) + b2
    return x2d + ff


# ---------------------------------------------------------------------------
# Pallas kernels
# ---------------------------------------------------------------------------

def encoder_resident_kernel(x_ref, wqkv_ref, wo_ref, w1_ref, w2_ref, vec_ref,
                            o_ref, *, n_heads, n_layers, d_ff):
    """Whole encoder stack for one tile of chunks; all L layers of weights stay
    VMEM-resident (constant block index -> DMA'd from HBM exactly once)."""
    x = x_ref[...]
    T, S, D = x.shape
    x2d = x.reshape(T * S, D)
    for l in range(n_layers):            # unrolled; typical nLayers is small (default 2)
        x2d = _encoder_layer_compute(x2d, T, S, n_heads, d_ff,
                                     wqkv_ref[l], wo_ref[l], w1_ref[l], w2_ref[l],
                                     vec_ref[l])
    o_ref[...] = x2d.reshape(T, S, D)


def encoder_streamed_kernel(x_ref, wqkv_ref, wo_ref, w1_ref, w2_ref, vec_ref,
                            o_ref, *, n_heads, d_ff):
    """Fallback for weight stacks too large for VMEM: grid = (tiles, layers); the
    residual stream lives in the revisited output block while the next layer's
    weights are streamed / double-buffered by the BlockSpec pipeline."""
    l = pl.program_id(1)

    @pl.when(l == 0)
    def _():                              # layer 0 consumes the embedded input
        o_ref[...] = x_ref[...]

    x = o_ref[...]
    T, S, D = x.shape
    x2d = _encoder_layer_compute(x.reshape(T * S, D), T, S, n_heads, d_ff,
                                 wqkv_ref[...], wo_ref[...], w1_ref[...], w2_ref[...],
                                 vec_ref[...])
    o_ref[...] = x2d.reshape(T, S, D)


def head_mlp_kernel(x_ref, w1_ref, b1_ref, w2_ref, b2_ref, o_ref, acc_ref):
    """ffnn block (Linear -> ReLU, dropout = identity) + fcOutput, reduction-tiled."""
    kk = pl.program_id(0)

    @pl.when(kk == 0)
    def _():
        acc_ref[...] = jnp.zeros_like(acc_ref)

    acc_ref[...] += jnp.dot(x_ref[...].astype(jnp.bfloat16), w1_ref[...],
                            preferred_element_type=jnp.float32)

    @pl.when(kk == pl.num_programs(0) - 1)
    def _():
        h = jnp.maximum(acc_ref[...] + b1_ref[...], 0.0)
        o_ref[...] = jnp.dot(h.astype(jnp.bfloat16), w2_ref[...],
                             preferred_element_type=jnp.float32) + b2_ref[...]


# ---------------------------------------------------------------------------
# pallas_call wrappers
# ---------------------------------------------------------------------------

def encoder_stack(x, sp, n_heads, *, tile_n=None, force_streamed=False):
    N, S, D = x.shape
    L, _, F = sp['w1'].shape
    NV, VM = sp['vec'].shape[1:]
    resident, tile_n, vmem_limit = _encoder_plan(
        N, S, D, F, L, NV, VM, tile_n=tile_n, force_streamed=force_streamed)

    if resident:
        kernel = functools.partial(encoder_resident_kernel,
                                   n_heads=n_heads, n_layers=L, d_ff=F)
        grid = (N // tile_n,)
        act = pl.BlockSpec((tile_n, S, D), lambda i: (i, 0, 0))
        full = lambda *shape: pl.BlockSpec(tuple(shape), lambda i: (0,) * len(shape))
        in_specs = [act,
                    full(L, D, 3 * D), full(L, D, D), full(L, D, F), full(L, F, D),
                    full(L, NV, VM)]
        out_spec = act
        dims = ("parallel",)
    else:
        kernel = functools.partial(encoder_streamed_kernel, n_heads=n_heads, d_ff=F)
        grid = (N // tile_n, L)                 # layer axis innermost / "arbitrary"
        act = pl.BlockSpec((tile_n, S, D), lambda i, l: (i, 0, 0))
        lay = lambda d0, d1: pl.BlockSpec((None, d0, d1), lambda i, l: (l, 0, 0))
        in_specs = [act,
                    lay(D, 3 * D), lay(D, D), lay(D, F), lay(F, D), lay(NV, VM)]
        out_spec = act
        dims = ("parallel", "arbitrary")

    return pl.pallas_call(
        kernel,
        out_shape=jax.ShapeDtypeStruct((N, S, D), jnp.float32),
        grid_spec=pltpu.PrefetchScalarGridSpec(
            num_scalar_prefetch=0, grid=grid,
            in_specs=in_specs, out_specs=out_spec),
        compiler_params=pltpu.CompilerParams(
            dimension_semantics=dims, vmem_limit_bytes=vmem_limit),
    )(x, sp['wqkv'], sp['wo'], sp['w1'], sp['w2'], sp['vec'])


def head_mlp(x, w1, b1, w2, b2, *, tile_k=None):
    Bx, IN = x.shape
    H1 = w1.shape[1]
    OUT = w2.shape[1]
    if tile_k is None:
        tile_k = _reduction_tile(IN, target=4096, quantum=128)
    assert IN % tile_k == 0, (IN, tile_k)
    cap = _tpu_vmem_bytes()

    return pl.pallas_call(
        head_mlp_kernel,
        out_shape=jax.ShapeDtypeStruct((Bx, OUT), jnp.float32),
        grid_spec=pltpu.PrefetchScalarGridSpec(
            num_scalar_prefetch=0,
            grid=(IN // tile_k,),
            in_specs=[
                _spec_maybe_buffered((Bx, tile_k), lambda k: (0, k), 3),   # activations
                _spec_maybe_buffered((tile_k, H1), lambda k: (k, 0), 3),   # wf1 streamed
                pl.BlockSpec((1, H1), lambda k: (0, 0)),
                pl.BlockSpec((H1, OUT), lambda k: (0, 0)),
                pl.BlockSpec((1, OUT), lambda k: (0, 0)),
            ],
            out_specs=pl.BlockSpec((Bx, OUT), lambda k: (0, 0)),
            scratch_shapes=[pltpu.VMEM((Bx, H1), jnp.float32)],
        ),
        compiler_params=pltpu.CompilerParams(
            dimension_semantics=("arbitrary",),
            vmem_limit_bytes=int(cap * 0.82)),
    )(x, w1, b1, w2, b2)


def _stack_layer_params(layers, n_heads):
    """Stack per-layer params with a leading layer axis.  Matrices go to bf16 with
    1/sqrt(hd) folded into the Q columns / bq; the 10 small f32 vectors are packed
    into one (L, 10, Vmax) array so each layer needs a single small DMA."""
    D = layers[0]['wqkv'].shape[0]
    F = layers[0]['w1'].shape[1]
    vmax = max(D, F)
    hd = D // n_heads
    scale = 1.0 / math.sqrt(hd)
    bf16, f32 = jnp.bfloat16, jnp.float32

    def pad_row(v):
        v = v.reshape(-1).astype(f32)
        return jnp.pad(v, (0, vmax - v.shape[0]))

    wqkv_l, wo_l, w1_l, w2_l, vec_l = [], [], [], [], []
    for p in layers:
        wqkv = p['wqkv'].astype(f32)
        wqkv = wqkv.at[:, :D].multiply(scale)      # fold 1/sqrt(hd) into the Q columns
        wqkv_l.append(wqkv.astype(bf16))
        wo_l.append(p['wo'].astype(bf16))
        w1_l.append(p['w1'].astype(bf16))
        w2_l.append(p['w2'].astype(bf16))
        bqkv = p['bqkv'].reshape(-1)
        rows = [bqkv[:D] * scale, bqkv[D:2 * D], bqkv[2 * D:],   # bq (scaled), bk, bv
                p['bo'], p['ln1g'], p['ln1b'], p['ln2g'], p['ln2b'], p['b2'], p['b1']]
        vec_l.append(jnp.stack([pad_row(r) for r in rows], axis=0))
    return dict(wqkv=jnp.stack(wqkv_l), wo=jnp.stack(wo_l),
                w1=jnp.stack(w1_l), w2=jnp.stack(w2_l),
                vec=jnp.stack(vec_l).astype(f32))


# ---------------------------------------------------------------------------
# Pure-JAX reference (same bf16-matmul / f32-accumulate precision; built from the
# ORIGINAL per-layer params, so it also validates the packing / scale folding)
# ---------------------------------------------------------------------------

def _ref_encoder_layer(x, p, n_heads):
    N, S, D = x.shape
    hd = D // n_heads
    f32, bf16 = jnp.float32, jnp.bfloat16
    wq = p['wqkv'][:, :D].astype(bf16)
    wk = p['wqkv'][:, D:2 * D].astype(bf16)
    wv = p['wqkv'][:, 2 * D:].astype(bf16)
    bq, bk, bv = p['bqkv'][:, :D], p['bqkv'][:, D:2 * D], p['bqkv'][:, 2 * D:]

    h = _layer_norm(x, p['ln1g'], p['ln1b']).astype(bf16)
    q = jnp.einsum('nsd,de->nse', h, wq, preferred_element_type=f32) + bq
    k = jnp.einsum('nsd,de->nse', h, wk, preferred_element_type=f32) + bk
    v = jnp.einsum('nsd,de->nse', h, wv, preferred_element_type=f32) + bv
    q = q * (1.0 / math.sqrt(hd))
    qh = q.reshape(N, S, n_heads, hd).transpose(0, 2, 1, 3).astype(bf16)
    kh = k.reshape(N, S, n_heads, hd).transpose(0, 2, 1, 3).astype(bf16)
    vh = v.reshape(N, S, n_heads, hd).transpose(0, 2, 1, 3).astype(bf16)
    s = jnp.einsum('nhqd,nhkd->nhqk', qh, kh, preferred_element_type=f32)
    a = jax.nn.softmax(s, axis=-1)
    o = jnp.einsum('nhqk,nhkd->nhqd', a.astype(bf16), vh, preferred_element_type=f32)
    o = o.transpose(0, 2, 1, 3).reshape(N, S, D)
    x = x + jnp.einsum('nsd,de->nse', o.astype(bf16), p['wo'].astype(bf16),
                       preferred_element_type=f32) + p['bo']
    h2 = _layer_norm(x, p['ln2g'], p['ln2b']).astype(bf16)
    ff = jnp.einsum('nsd,df->nsf', h2, p['w1'].astype(bf16),
                    preferred_element_type=f32) + p['b1']
    ff = jnp.maximum(ff, 0.0)
    ff = jnp.einsum('nsf,fd->nsd', ff.astype(bf16), p['w2'].astype(bf16),
                    preferred_element_type=f32) + p['b2']
    return x + ff


def _ref_head_mlp(x, w1, b1, w2, b2):
    f32, bf16 = jnp.float32, jnp.bfloat16
    h = jnp.maximum(jnp.dot(x.astype(bf16), w1.astype(bf16),
                            preferred_element_type=f32) + b1, 0.0)
    return jnp.dot(h.astype(bf16), w2.astype(bf16),
                   preferred_element_type=f32) + b2


# ---------------------------------------------------------------------------
# Full forward (glue + kernels)
# ---------------------------------------------------------------------------

def forward(tokens, params, *, chunk_size, d_model, n_heads, use_pallas=True,
            enc_tile_n=None, head_tile_k=None, force_streamed=False):
    B, maxlen = tokens.shape
    nc = -(-maxlen // chunk_size)
    pad = nc * chunk_size - maxlen
    if pad:
        tokens = jnp.pad(tokens, ((0, 0), (0, pad)))       # split() zero-pads last chunk
    tok = tokens.reshape(B, nc, chunk_size)

    # nn.Embedding lookup * sqrt(d_model) (gather kept in plain JAX glue)
    x = jnp.take(params['emb'], tok, axis=0) * math.sqrt(d_model)    # (B, nc, S, D)

    # PositionalEncoding: the module feeds a batch-first tensor into a seq-first PE,
    # so pe[:x.size(0)] indexes the *batch* dim and broadcasts over positions.
    # TODO(synk): this reproduces the module's (likely unintended) broadcasting.
    pos = jnp.arange(B, dtype=jnp.float32)[:, None]
    div = jnp.exp(jnp.arange(0, d_model, 2, dtype=jnp.float32)
                  * (-math.log(10000.0) / d_model))
    pe = jnp.zeros((B, d_model), jnp.float32)
    pe = pe.at[:, 0::2].set(jnp.sin(pos * div))
    pe = pe.at[:, 1::2].set(jnp.cos(pos * div))
    x = x + pe[:, None, None, :]
    # TODO(synk): dropout layers are identity here (inference / eval mode).

    # transformer encoder over each chunk independently
    # TODO(synk): the zero-padded tail chunk is attended without a mask, matching split().
    x = x.reshape(B * nc, chunk_size, d_model).astype(jnp.float32)
    if use_pallas:
        sp = _stack_layer_params(params['layers'], n_heads)
        x = encoder_stack(x, sp, n_heads, tile_n=enc_tile_n,
                          force_streamed=force_streamed)
    else:
        for p in params['layers']:
            x = _ref_encoder_layer(x, p, n_heads)

    # torch.cat(chunks, dim=1) then .view(B, -1)
    x = x.reshape(B, nc * chunk_size * d_model)
    if use_pallas:
        return head_mlp(x, params['wf1'].astype(jnp.bfloat16), params['bf1'],
                        params['wout'].astype(jnp.bfloat16), params['bout'],
                        tile_k=head_tile_k)
    return _ref_head_mlp(x, params['wf1'], params['bf1'],
                         params['wout'], params['bout'])


# ---------------------------------------------------------------------------
# Deterministic parameter init (shapes per the module's __init__)
# ---------------------------------------------------------------------------

def init_params(key, vocab_size, d_model, n_heads, d_hidden, n_layers,
                hidden_neurons, num_classes, input_neurons):
    keys = jax.random.split(key, 3 + n_layers)
    u = lambda k, shape, r=0.1: jax.random.uniform(k, shape, jnp.float32, -r, r)

    emb = u(keys[0], (vocab_size, d_model))

    layers = []
    for li in range(n_layers):
        lk = jax.random.split(keys[3 + li], 12)
        layers.append(dict(
            wqkv=u(lk[0], (d_model, 3 * d_model)),
            bqkv=u(lk[1], (1, 3 * d_model), 0.05),
            wo=u(lk[2], (d_model, d_model)),
            bo=u(lk[3], (1, d_model), 0.05),
            ln1g=1.0 + u(lk[4], (1, d_model), 0.05),
            ln1b=u(lk[5], (1, d_model), 0.05),
            ln2g=1.0 + u(lk[6], (1, d_model), 0.05),
            ln2b=u(lk[7], (1, d_model), 0.05),
            w1=u(lk[8], (d_model, d_hidden)),
            b1=u(lk[9], (1, d_hidden), 0.05),
            w2=u(lk[10], (d_hidden, d_model)),
            b2=u(lk[11], (1, d_model), 0.05),
        ))

    wf1 = u(keys[1], (input_neurons, hidden_neurons[0]))
    bf1 = jnp.zeros((1, hidden_neurons[0]), jnp.float32)   # module zeroes ffnn biases
    out_dim = 1 if num_classes in (1, 2) else num_classes
    wout = u(keys[2], (hidden_neurons[0], out_dim))
    bout = jnp.zeros((1, out_dim), jnp.float32)
    return dict(emb=emb, layers=layers, wf1=wf1, bf1=bf1, wout=wout, bout=bout)


# ---------------------------------------------------------------------------
# Main
# ---------------------------------------------------------------------------

if __name__ == "__main__":
    VOCAB, MAXLEN, CHUNK = 64, 16, 8
    D_MODEL, N_HEADS, D_HIDDEN, N_LAYERS = 32, 4, 64, 2
    HIDDEN, NUM_CLASSES = [64], 1
    B = 2
    NC = -(-MAXLEN // CHUNK)
    INPUT_NEURONS = CHUNK * NC * D_MODEL          # = chunk_size * nr_of_chunks * dModel

    key = jax.random.PRNGKey(0)
    k_tok, k_par = jax.random.split(key)
    tokens = jax.random.randint(k_tok, (B, MAXLEN), 0, VOCAB, dtype=jnp.int32)
    params = init_params(k_par, VOCAB, D_MODEL, N_HEADS, D_HIDDEN, N_LAYERS,
                         HIDDEN, NUM_CLASSES, INPUT_NEURONS)

    common = dict(chunk_size=CHUNK, d_model=D_MODEL, n_heads=N_HEADS)

    ref = jax.block_until_ready(forward(tokens, params, use_pallas=False, **common))

    # Primary path: weights-resident encoder.  enc_tile_n=2 / head_tile_k=128 keep the
    # parallel tile axis and the K-reduction loop exercised at toy sizes.
    out = jax.block_until_ready(
        forward(tokens, params, use_pallas=True, enc_tile_n=2, head_tile_k=128, **common))
    assert out.shape == (B, 1), out.shape
    assert jnp.allclose(out, ref, atol=2e-2, rtol=2e-2), (out, ref)

    # Fallback path: per-layer weight streaming (used when the stack exceeds VMEM).
    out_s = jax.block_until_ready(
        forward(tokens, params, use_pallas=True, enc_tile_n=2, head_tile_k=128,
                force_streamed=True, **common))
    assert jnp.allclose(out_s, ref, atol=2e-2, rtol=2e-2), (out_s, ref)

    print("KERNEL_OK")
</pallas_src>

<mosaic_0001>
module attributes {stable_mosaic.version = 11 : i64} {
  func.func @encoder_resident_kernel(%arg0: i32, %arg1: memref<2x8x32xf32, #tpu.memory_space<vmem>>, %arg2: memref<2x32x96xbf16, #tpu.memory_space<vmem>>, %arg3: memref<2x32x32xbf16, #tpu.memory_space<vmem>>, %arg4: memref<2x32x64xbf16, #tpu.memory_space<vmem>>, %arg5: memref<2x64x32xbf16, #tpu.memory_space<vmem>>, %arg6: memref<2x10x64xf32, #tpu.memory_space<vmem>>, %arg7: memref<2x8x32xf32, #tpu.memory_space<vmem>>) attributes {dimension_semantics = [#tpu.dimension_semantics<parallel>], iteration_bounds = array<i64: 2>, scalar_prefetch = 0 : i64, scratch_operands = 0 : i64, tpu.core_type = #tpu.core_type<tc>, window_params = [{transform_indices = @transform_0, window_bounds = array<i64: 2, 8, 32>}, {pipeline_mode = #tpu.pipeline_mode<synchronous>, transform_indices = @transform_1, window_bounds = array<i64: 2, 32, 96>}, {pipeline_mode = #tpu.pipeline_mode<synchronous>, transform_indices = @transform_2, window_bounds = array<i64: 2, 32, 32>}, {pipeline_mode = #tpu.pipeline_mode<synchronous>, transform_indices = @transform_3, window_bounds = array<i64: 2, 32, 64>}, {pipeline_mode = #tpu.pipeline_mode<synchronous>, transform_indices = @transform_4, window_bounds = array<i64: 2, 64, 32>}, {pipeline_mode = #tpu.pipeline_mode<synchronous>, transform_indices = @transform_5, window_bounds = array<i64: 2, 10, 64>}, {transform_indices = @transform_6, window_bounds = array<i64: 2, 8, 32>}]} {
    %c0 = arith.constant 0 : index
    %c0_0 = arith.constant 0 : index
    %c0_1 = arith.constant 0 : index
    %0 = vector.load %arg1[%c0, %c0_0, %c0_1] : memref<2x8x32xf32, #tpu.memory_space<vmem>>, vector<2x8x32xf32>
    %1 = vector.shape_cast %0 : vector<2x8x32xf32> to vector<16x32xf32>
    %c0_2 = arith.constant 0 : index
    %c0_3 = arith.constant 0 : index
    %c0_4 = arith.constant 0 : index
    %2 = vector.load %arg2[%c0_2, %c0_3, %c0_4] : memref<2x32x96xbf16, #tpu.memory_space<vmem>>, vector<1x32x96xbf16>
    %3 = vector.shape_cast %2 : vector<1x32x96xbf16> to vector<32x96xbf16>
    %c0_5 = arith.constant 0 : index
    %c0_6 = arith.constant 0 : index
    %c0_7 = arith.constant 0 : index
    %4 = vector.load %arg3[%c0_5, %c0_6, %c0_7] : memref<2x32x32xbf16, #tpu.memory_space<vmem>>, vector<1x32x32xbf16>
    %5 = vector.shape_cast %4 : vector<1x32x32xbf16> to vector<32x32xbf16>
    %c0_8 = arith.constant 0 : index
    %c0_9 = arith.constant 0 : index
    %c0_10 = arith.constant 0 : index
    %6 = vector.load %arg4[%c0_8, %c0_9, %c0_10] : memref<2x32x64xbf16, #tpu.memory_space<vmem>>, vector<1x32x64xbf16>
    %7 = vector.shape_cast %6 : vector<1x32x64xbf16> to vector<32x64xbf16>
    %c0_11 = arith.constant 0 : index
    %c0_12 = arith.constant 0 : index
    %c0_13 = arith.constant 0 : index
    %8 = vector.load %arg5[%c0_11, %c0_12, %c0_13] : memref<2x64x32xbf16, #tpu.memory_space<vmem>>, vector<1x64x32xbf16>
    %9 = vector.shape_cast %8 : vector<1x64x32xbf16> to vector<64x32xbf16>
    %c0_14 = arith.constant 0 : index
    %c0_15 = arith.constant 0 : index
    %c0_16 = arith.constant 0 : index
    %10 = vector.load %arg6[%c0_14, %c0_15, %c0_16] : memref<2x10x64xf32, #tpu.memory_space<vmem>>, vector<1x10x64xf32>
    %11 = vector.shape_cast %10 : vector<1x10x64xf32> to vector<10x64xf32>
    %12 = vector.extract_strided_slice %11 {offsets = [0, 0], sizes = [1, 32], strides = [1, 1]} : vector<10x64xf32> to vector<1x32xf32>
    %13 = vector.extract_strided_slice %11 {offsets = [1, 0], sizes = [1, 32], strides = [1, 1]} : vector<10x64xf32> to vector<1x32xf32>
    %14 = vector.extract_strided_slice %11 {offsets = [2, 0], sizes = [1, 32], strides = [1, 1]} : vector<10x64xf32> to vector<1x32xf32>
    %15 = vector.extract_strided_slice %11 {offsets = [3, 0], sizes = [1, 32], strides = [1, 1]} : vector<10x64xf32> to vector<1x32xf32>
    %16 = vector.extract_strided_slice %11 {offsets = [4, 0], sizes = [1, 32], strides = [1, 1]} : vector<10x64xf32> to vector<1x32xf32>
    %17 = vector.extract_strided_slice %11 {offsets = [5, 0], sizes = [1, 32], strides = [1, 1]} : vector<10x64xf32> to vector<1x32xf32>
    %18 = vector.extract_strided_slice %11 {offsets = [6, 0], sizes = [1, 32], strides = [1, 1]} : vector<10x64xf32> to vector<1x32xf32>
    %19 = vector.extract_strided_slice %11 {offsets = [7, 0], sizes = [1, 32], strides = [1, 1]} : vector<10x64xf32> to vector<1x32xf32>
    %20 = vector.extract_strided_slice %11 {offsets = [8, 0], sizes = [1, 32], strides = [1, 1]} : vector<10x64xf32> to vector<1x32xf32>
    %21 = vector.extract_strided_slice %11 {offsets = [9, 0], sizes = [1, 64], strides = [1, 1]} : vector<10x64xf32> to vector<1x64xf32>
    %cst = arith.constant dense<0.000000e+00> : vector<16xf32>
    %22 = vector.multi_reduction <add>, %1, %cst [1] : vector<16x32xf32> to vector<16xf32>
    %23 = vector.shape_cast %22 : vector<16xf32> to vector<16x1xf32>
    %cst_17 = arith.constant 3.200000e+01 : f32
    %24 = vector.broadcast %cst_17 : f32 to vector<16x1xf32>
    %25 = arith.divf %23, %24 : vector<16x1xf32>
    %26 = vector.broadcast %25 : vector<16x1xf32> to vector<16x32xf32>
    %27 = arith.subf %1, %26 : vector<16x32xf32>
    %28 = arith.mulf %27, %27 : vector<16x32xf32>
    %cst_18 = arith.constant dense<0.000000e+00> : vector<16xf32>
    %29 = vector.multi_reduction <add>, %28, %cst_18 [1] : vector<16x32xf32> to vector<16xf32>
    %30 = vector.shape_cast %29 : vector<16xf32> to vector<16x1xf32>
    %cst_19 = arith.constant 3.200000e+01 : f32
    %31 = vector.broadcast %cst_19 : f32 to vector<16x1xf32>
    %32 = arith.divf %30, %31 : vector<16x1xf32>
    %cst_20 = arith.constant 9.99999974E-6 : f32
    %33 = vector.broadcast %cst_20 : f32 to vector<16x1xf32>
    %34 = arith.addf %32, %33 : vector<16x1xf32>
    %35 = math.rsqrt %34 : vector<16x1xf32>
    %36 = vector.broadcast %35 : vector<16x1xf32> to vector<16x32xf32>
    %37 = arith.mulf %27, %36 : vector<16x32xf32>
    %38 = vector.broadcast %16 : vector<1x32xf32> to vector<16x32xf32>
    %39 = arith.mulf %37, %38 : vector<16x32xf32>
    %40 = vector.broadcast %17 : vector<1x32xf32> to vector<16x32xf32>
    %41 = arith.addf %39, %40 : vector<16x32xf32>
    %42 = arith.truncf %41 : vector<16x32xf32> to vector<16x32xbf16>
    %cst_21 = arith.constant dense<0.000000e+00> : vector<16x96xf32>
    %43 = tpu.matmul %42, %3, %cst_21 {dimension_numbers = #tpu.dot_dimension_numbers<[1], [0], [0], [1], [0, 0, 1, 1], [], []>} : vector<16x32xbf16>, vector<32x96xbf16>, vector<16x96xf32> -> vector<16x96xf32>
    %44 = vector.extract_strided_slice %43 {offsets = [0, 0], sizes = [16, 32], strides = [1, 1]} : vector<16x96xf32> to vector<16x32xf32>
    %45 = vector.broadcast %12 : vector<1x32xf32> to vector<16x32xf32>
    %46 = arith.addf %44, %45 : vector<16x32xf32>
    %47 = vector.shape_cast %46 : vector<16x32xf32> to vector<2x8x32xf32>
    %48 = vector.extract_strided_slice %43 {offsets = [0, 32], sizes = [16, 32], strides = [1, 1]} : vector<16x96xf32> to vector<16x32xf32>
    %49 = vector.broadcast %13 : vector<1x32xf32> to vector<16x32xf32>
    %50 = arith.addf %48, %49 : vector<16x32xf32>
    %51 = vector.shape_cast %50 : vector<16x32xf32> to vector<2x8x32xf32>
    %52 = vector.extract_strided_slice %43 {offsets = [0, 64], sizes = [16, 32], strides = [1, 1]} : vector<16x96xf32> to vector<16x32xf32>
    %53 = vector.broadcast %14 : vector<1x32xf32> to vector<16x32xf32>
    %54 = arith.addf %52, %53 : vector<16x32xf32>
    %55 = vector.shape_cast %54 : vector<16x32xf32> to vector<2x8x32xf32>
    %56 = vector.extract_strided_slice %47 {offsets = [0, 0, 0], sizes = [2, 8, 8], strides = [1, 1, 1]} : vector<2x8x32xf32> to vector<2x8x8xf32>
    %57 = arith.truncf %56 : vector<2x8x8xf32> to vector<2x8x8xbf16>
    %58 = vector.extract_strided_slice %51 {offsets = [0, 0, 0], sizes = [2, 8, 8], strides = [1, 1, 1]} : vector<2x8x32xf32> to vector<2x8x8xf32>
    %59 = arith.truncf %58 : vector<2x8x8xf32> to vector<2x8x8xbf16>
    %60 = vector.extract_strided_slice %55 {offsets = [0, 0, 0], sizes = [2, 8, 8], strides = [1, 1, 1]} : vector<2x8x32xf32> to vector<2x8x8xf32>
    %61 = arith.truncf %60 : vector<2x8x8xf32> to vector<2x8x8xbf16>
    "tpu.trace_start"() <{level = 10 : i32, message = "bqd,bkd->bqk"}> : () -> ()
    %cst_22 = arith.constant dense<0.000000e+00> : vector<2x8x8xf32>
    %62 = tpu.matmul %57, %59, %cst_22 {dimension_numbers = #tpu.dot_dimension_numbers<[2], [2], [1], [1], [0, 0, 0, 1, 1, 1], [0], [0]>} : vector<2x8x8xbf16>, vector<2x8x8xbf16>, vector<2x8x8xf32> -> vector<2x8x8xf32>
    "tpu.trace_stop"() : () -> ()
    %cst_23 = arith.constant dense<0xFF800000> : vector<2x8xf32>
    %63 = vector.multi_reduction <maximumf>, %62, %cst_23 [2] : vector<2x8x8xf32> to vector<2x8xf32>
    %64 = vector.shape_cast %63 : vector<2x8xf32> to vector<2x8x1xf32>
    %65 = vector.broadcast %64 : vector<2x8x1xf32> to vector<2x8x8xf32>
    %66 = arith.subf %62, %65 : vector<2x8x8xf32>
    %67 = math.exp %66 : vector<2x8x8xf32>
    %cst_24 = arith.constant dense<0.000000e+00> : vector<2x8xf32>
    %68 = vector.multi_reduction <add>, %67, %cst_24 [2] : vector<2x8x8xf32> to vector<2x8xf32>
    %69 = vector.shape_cast %68 : vector<2x8xf32> to vector<2x8x1xf32>
    %70 = tpu.reciprocal %69 : vector<2x8x1xf32> -> vector<2x8x1xf32>
    %71 = vector.broadcast %70 : vector<2x8x1xf32> to vector<2x8x8xf32>
    %72 = arith.mulf %67, %71 : vector<2x8x8xf32>
    %73 = arith.truncf %72 : vector<2x8x8xf32> to vector<2x8x8xbf16>
    "tpu.trace_start"() <{level = 10 : i32, message = "bqk,bkd->bqd"}> : () -> ()
    %cst_25 = arith.constant dense<0.000000e+00> : vector<2x8x8xf32>
    %74 = tpu.matmul %73, %61, %cst_25 {dimension_numbers = #tpu.dot_dimension_numbers<[2], [1], [1], [2], [0, 0, 0, 1, 1, 2], [0], [0]>} : vector<2x8x8xbf16>, vector<2x8x8xbf16>, vector<2x8x8xf32> -> vector<2x8x8xf32>
    "tpu.trace_stop"() : () -> ()
    %75 = vector.extract_strided_slice %47 {offsets = [0, 0, 8], sizes = [2, 8, 8], strides = [1, 1, 1]} : vector<2x8x32xf32> to vector<2x8x8xf32>
    %76 = arith.truncf %75 : vector<2x8x8xf32> to vector<2x8x8xbf16>
    %77 = vector.extract_strided_slice %51 {offsets = [0, 0, 8], sizes = [2, 8, 8], strides = [1, 1, 1]} : vector<2x8x32xf32> to vector<2x8x8xf32>
    %78 = arith.truncf %77 : vector<2x8x8xf32> to vector<2x8x8xbf16>
    %79 = vector.extract_strided_slice %55 {offsets = [0, 0, 8], sizes = [2, 8, 8], strides = [1, 1, 1]} : vector<2x8x32xf32> to vector<2x8x8xf32>
    %80 = arith.truncf %79 : vector<2x8x8xf32> to vector<2x8x8xbf16>
    "tpu.trace_start"() <{level = 10 : i32, message = "bqd,bkd->bqk"}> : () -> ()
    %cst_26 = arith.constant dense<0.000000e+00> : vector<2x8x8xf32>
    %81 = tpu.matmul %76, %78, %cst_26 {dimension_numbers = #tpu.dot_dimension_numbers<[2], [2], [1], [1], [0, 0, 0, 1, 1, 1], [0], [0]>} : vector<2x8x8xbf16>, vector<2x8x8xbf16>, vector<2x8x8xf32> -> vector<2x8x8xf32>
    "tpu.trace_stop"() : () -> ()
    %cst_27 = arith.constant dense<0xFF800000> : vector<2x8xf32>
    %82 = vector.multi_reduction <maximumf>, %81, %cst_27 [2] : vector<2x8x8xf32> to vector<2x8xf32>
    %83 = vector.shape_cast %82 : vector<2x8xf32> to vector<2x8x1xf32>
    %84 = vector.broadcast %83 : vector<2x8x1xf32> to vector<2x8x8xf32>
    %85 = arith.subf %81, %84 : vector<2x8x8xf32>
    %86 = math.exp %85 : vector<2x8x8xf32>
    %cst_28 = arith.constant dense<0.000000e+00> : vector<2x8xf32>
    %87 = vector.multi_reduction <add>, %86, %cst_28 [2] : vector<2x8x8xf32> to vector<2x8xf32>
    %88 = vector.shape_cast %87 : vector<2x8xf32> to vector<2x8x1xf32>
    %89 = tpu.reciprocal %88 : vector<2x8x1xf32> -> vector<2x8x1xf32>
    %90 = vector.broadcast %89 : vector<2x8x1xf32> to vector<2x8x8xf32>
    %91 = arith.mulf %86, %90 : vector<2x8x8xf32>
    %92 = arith.truncf %91 : vector<2x8x8xf32> to vector<2x8x8xbf16>
    "tpu.trace_start"() <{level = 10 : i32, message = "bqk,bkd->bqd"}> : () -> ()
    %cst_29 = arith.constant dense<0.000000e+00> : vector<2x8x8xf32>
    %93 = tpu.matmul %92, %80, %cst_29 {dimension_numbers = #tpu.dot_dimension_numbers<[2], [1], [1], [2], [0, 0, 0, 1, 1, 2], [0], [0]>} : vector<2x8x8xbf16>, vector<2x8x8xbf16>, vector<2x8x8xf32> -> vector<2x8x8xf32>
    "tpu.trace_stop"() : () -> ()
    %94 = vector.extract_strided_slice %47 {offsets = [0, 0, 16], sizes = [2, 8, 8], strides = [1, 1, 1]} : vector<2x8x32xf32> to vector<2x8x8xf32>
    %95 = arith.truncf %94 : vector<2x8x8xf32> to vector<2x8x8xbf16>
    %96 = vector.extract_strided_slice %51 {offsets = [0, 0, 16], sizes = [2, 8, 8], strides = [1, 1, 1]} : vector<2x8x32xf32> to vector<2x8x8xf32>
    %97 = arith.truncf %96 : vector<2x8x8xf32> to vector<2x8x8xbf16>
    %98 = vector.extract_strided_slice %55 {offsets = [0, 0, 16], sizes = [2, 8, 8], strides = [1, 1, 1]} : vector<2x8x32xf32> to vector<2x8x8xf32>
    %99 = arith.truncf %98 : vector<2x8x8xf32> to vector<2x8x8xbf16>
    "tpu.trace_start"() <{level = 10 : i32, message = "bqd,bkd->bqk"}> : () -> ()
    %cst_30 = arith.constant dense<0.000000e+00> : vector<2x8x8xf32>
    %100 = tpu.matmul %95, %97, %cst_30 {dimension_numbers = #tpu.dot_dimension_numbers<[2], [2], [1], [1], [0, 0, 0, 1, 1, 1], [0], [0]>} : vector<2x8x8xbf16>, vector<2x8x8xbf16>, vector<2x8x8xf32> -> vector<2x8x8xf32>
    "tpu.trace_stop"() : () -> ()
    %cst_31 = arith.constant dense<0xFF800000> : vector<2x8xf32>
    %101 = vector.multi_reduction <maximumf>, %100, %cst_31 [2] : vector<2x8x8xf32> to vector<2x8xf32>
    %102 = vector.shape_cast %101 : vector<2x8xf32> to vector<2x8x1xf32>
    %103 = vector.broadcast %102 : vector<2x8x1xf32> to vector<2x8x8xf32>
    %104 = arith.subf %100, %103 : vector<2x8x8xf32>
    %105 = math.exp %104 : vector<2x8x8xf32>
    %cst_32 = arith.constant dense<0.000000e+00> : vector<2x8xf32>
    %106 = vector.multi_reduction <add>, %105, %cst_32 [2] : vector<2x8x8xf32> to vector<2x8xf32>
    %107 = vector.shape_cast %106 : vector<2x8xf32> to vector<2x8x1xf32>
    %108 = tpu.reciprocal %107 : vector<2x8x1xf32> -> vector<2x8x1xf32>
    %109 = vector.broadcast %108 : vector<2x8x1xf32> to vector<2x8x8xf32>
    %110 = arith.mulf %105, %109 : vector<2x8x8xf32>
    %111 = arith.truncf %110 : vector<2x8x8xf32> to vector<2x8x8xbf16>
    "tpu.trace_start"() <{level = 10 : i32, message = "bqk,bkd->bqd"}> : () -> ()
    %cst_33 = arith.constant dense<0.000000e+00> : vector<2x8x8xf32>
    %112 = tpu.matmul %111, %99, %cst_33 {dimension_numbers = #tpu.dot_dimension_numbers<[2], [1], [1], [2], [0, 0, 0, 1, 1, 2], [0], [0]>} : vector<2x8x8xbf16>, vector<2x8x8xbf16>, vector<2x8x8xf32> -> vector<2x8x8xf32>
    "tpu.trace_stop"() : () -> ()
    %113 = vector.extract_strided_slice %47 {offsets = [0, 0, 24], sizes = [2, 8, 8], strides = [1, 1, 1]} : vector<2x8x32xf32> to vector<2x8x8xf32>
    %114 = arith.truncf %113 : vector<2x8x8xf32> to vector<2x8x8xbf16>
    %115 = vector.extract_strided_slice %51 {offsets = [0, 0, 24], sizes = [2, 8, 8], strides = [1, 1, 1]} : vector<2x8x32xf32> to vector<2x8x8xf32>
    %116 = arith.truncf %115 : vector<2x8x8xf32> to vector<2x8x8xbf16>
    %117 = vector.extract_strided_slice %55 {offsets = [0, 0, 24], sizes = [2, 8, 8], strides = [1, 1, 1]} : vector<2x8x32xf32> to vector<2x8x8xf32>
    %118 = arith.truncf %117 : vector<2x8x8xf32> to vector<2x8x8xbf16>
    "tpu.trace_start"() <{level = 10 : i32, message = "bqd,bkd->bqk"}> : () -> ()
    %cst_34 = arith.constant dense<0.000000e+00> : vector<2x8x8xf32>
    %119 = tpu.matmul %114, %116, %cst_34 {dimension_numbers = #tpu.dot_dimension_numbers<[2], [2], [1], [1], [0, 0, 0, 1, 1, 1], [0], [0]>} : vector<2x8x8xbf16>, vector<2x8x8xbf16>, vector<2x8x8xf32> -> vector<2x8x8xf32>
    "tpu.trace_stop"() : () -> ()
    %cst_35 = arith.constant dense<0xFF800000> : vector<2x8xf32>
    %120 = vector.multi_reduction <maximumf>, %119, %cst_35 [2] : vector<2x8x8xf32> to vector<2x8xf32>
    %121 = vector.shape_cast %120 : vector<2x8xf32> to vector<2x8x1xf32>
    %122 = vector.broadcast %121 : vector<2x8x1xf32> to vector<2x8x8xf32>
    %123 = arith.subf %119, %122 : vector<2x8x8xf32>
    %124 = math.exp %123 : vector<2x8x8xf32>
    %cst_36 = arith.constant dense<0.000000e+00> : vector<2x8xf32>
    %125 = vector.multi_reduction <add>, %124, %cst_36 [2] : vector<2x8x8xf32> to vector<2x8xf32>
    %126 = vector.shape_cast %125 : vector<2x8xf32> to vector<2x8x1xf32>
    %127 = tpu.reciprocal %126 : vector<2x8x1xf32> -> vector<2x8x1xf32>
    %128 = vector.broadcast %127 : vector<2x8x1xf32> to vector<2x8x8xf32>
    %129 = arith.mulf %124, %128 : vector<2x8x8xf32>
    %130 = arith.truncf %129 : vector<2x8x8xf32> to vector<2x8x8xbf16>
    "tpu.trace_start"() <{level = 10 : i32, message = "bqk,bkd->bqd"}> : () -> ()
    %cst_37 = arith.constant dense<0.000000e+00> : vector<2x8x8xf32>
    %131 = tpu.matmul %130, %118, %cst_37 {dimension_numbers = #tpu.dot_dimension_numbers<[2], [1], [1], [2], [0, 0, 0, 1, 1, 2], [0], [0]>} : vector<2x8x8xbf16>, vector<2x8x8xbf16>, vector<2x8x8xf32> -> vector<2x8x8xf32>
    "tpu.trace_stop"() : () -> ()
    %132 = tpu.concatenate %74, %93, %112, %131 in 2 : vector<2x8x8xf32>, vector<2x8x8xf32>, vector<2x8x8xf32>, vector<2x8x8xf32> -> vector<2x8x32xf32>
    %133 = vector.shape_cast %132 : vector<2x8x32xf32> to vector<16x32xf32>
    %134 = arith.truncf %133 : vector<16x32xf32> to vector<16x32xbf16>
    %cst_38 = arith.constant dense<0.000000e+00> : vector<16x32xf32>
    %135 = tpu.matmul %134, %5, %cst_38 {dimension_numbers = #tpu.dot_dimension_numbers<[1], [0], [0], [1], [0, 0, 1, 1], [], []>} : vector<16x32xbf16>, vector<32x32xbf16>, vector<16x32xf32> -> vector<16x32xf32>
    %136 = arith.addf %1, %135 : vector<16x32xf32>
    %137 = vector.broadcast %15 : vector<1x32xf32> to vector<16x32xf32>
    %138 = arith.addf %136, %137 : vector<16x32xf32>
    %cst_39 = arith.constant dense<0.000000e+00> : vector<16xf32>
    %139 = vector.multi_reduction <add>, %138, %cst_39 [1] : vector<16x32xf32> to vector<16xf32>
    %140 = vector.shape_cast %139 : vector<16xf32> to vector<16x1xf32>
    %cst_40 = arith.constant 3.200000e+01 : f32
    %141 = vector.broadcast %cst_40 : f32 to vector<16x1xf32>
    %142 = arith.divf %140, %141 : vector<16x1xf32>
    %143 = vector.broadcast %142 : vector<16x1xf32> to vector<16x32xf32>
    %144 = arith.subf %138, %143 : vector<16x32xf32>
    %145 = arith.mulf %144, %144 : vector<16x32xf32>
    %cst_41 = arith.constant dense<0.000000e+00> : vector<16xf32>
    %146 = vector.multi_reduction <add>, %145, %cst_41 [1] : vector<16x32xf32> to vector<16xf32>
    %147 = vector.shape_cast %146 : vector<16xf32> to vector<16x1xf32>
    %cst_42 = arith.constant 3.200000e+01 : f32
    %148 = vector.broadcast %cst_42 : f32 to vector<16x1xf32>
    %149 = arith.divf %147, %148 : vector<16x1xf32>
    %cst_43 = arith.constant 9.99999974E-6 : f32
    %150 = vector.broadcast %cst_43 : f32 to vector<16x1xf32>
    %151 = arith.addf %149, %150 : vector<16x1xf32>
    %152 = math.rsqrt %151 : vector<16x1xf32>
    %153 = vector.broadcast %152 : vector<16x1xf32> to vector<16x32xf32>
    %154 = arith.mulf %144, %153 : vector<16x32xf32>
    %155 = vector.broadcast %18 : vector<1x32xf32> to vector<16x32xf32>
    %156 = arith.mulf %154, %155 : vector<16x32xf32>
    %157 = vector.broadcast %19 : vector<1x32xf32> to vector<16x32xf32>
    %158 = arith.addf %156, %157 : vector<16x32xf32>
    %159 = arith.truncf %158 : vector<16x32xf32> to vector<16x32xbf16>
    %cst_44 = arith.constant dense<0.000000e+00> : vector<16x64xf32>
    %160 = tpu.matmul %159, %7, %cst_44 {dimension_numbers = #tpu.dot_dimension_numbers<[1], [0], [0], [1], [0, 0, 1, 1], [], []>} : vector<16x32xbf16>, vector<32x64xbf16>, vector<16x64xf32> -> vector<16x64xf32>
    %161 = vector.broadcast %21 : vector<1x64xf32> to vector<16x64xf32>
    %162 = arith.addf %160, %161 : vector<16x64xf32>
    %cst_45 = arith.constant 0.000000e+00 : f32
    %163 = vector.broadcast %cst_45 : f32 to vector<16x64xf32>
    %164 = arith.maximumf %162, %163 : vector<16x64xf32>
    %165 = arith.truncf %164 : vector<16x64xf32> to vector<16x64xbf16>
    %cst_46 = arith.constant dense<0.000000e+00> : vector<16x32xf32>
    %166 = tpu.matmul %165, %9, %cst_46 {dimension_numbers = #tpu.dot_dimension_numbers<[1], [0], [0], [1], [0, 0, 1, 1], [], []>} : vector<16x64xbf16>, vector<64x32xbf16>, vector<16x32xf32> -> vector<16x32xf32>
    %167 = vector.broadcast %20 : vector<1x32xf32> to vector<16x32xf32>
    %168 = arith.addf %166, %167 : vector<16x32xf32>
    %169 = arith.addf %138, %168 : vector<16x32xf32>
    %c1 = arith.constant 1 : index
    %c0_47 = arith.constant 0 : index
    %c0_48 = arith.constant 0 : index
    %170 = vector.load %arg2[%c1, %c0_47, %c0_48] : memref<2x32x96xbf16, #tpu.memory_space<vmem>>, vector<1x32x96xbf16>
    %171 = vector.shape_cast %170 : vector<1x32x96xbf16> to vector<32x96xbf16>
    %c1_49 = arith.constant 1 : index
    %c0_50 = arith.constant 0 : index
    %c0_51 = arith.constant 0 : index
    %172 = vector.load %arg3[%c1_49, %c0_50, %c0_51] : memref<2x32x32xbf16, #tpu.memory_space<vmem>>, vector<1x32x32xbf16>
    %173 = vector.shape_cast %172 : vector<1x32x32xbf16> to vector<32x32xbf16>
    %c1_52 = arith.constant 1 : index
    %c0_53 = arith.constant 0 : index
    %c0_54 = arith.constant 0 : index
    %174 = vector.load %arg4[%c1_52, %c0_53, %c0_54] : memref<2x32x64xbf16, #tpu.memory_space<vmem>>, vector<1x32x64xbf16>
    %175 = vector.shape_cast %174 : vector<1x32x64xbf16> to vector<32x64xbf16>
    %c1_55 = arith.constant 1 : index
    %c0_56 = arith.constant 0 : index
    %c0_57 = arith.constant 0 : index
    %176 = vector.load %arg5[%c1_55, %c0_56, %c0_57] : memref<2x64x32xbf16, #tpu.memory_space<vmem>>, vector<1x64x32xbf16>
    %177 = vector.shape_cast %176 : vector<1x64x32xbf16> to vector<64x32xbf16>
    %c1_58 = arith.constant 1 : index
    %c0_59 = arith.constant 0 : index
    %c0_60 = arith.constant 0 : index
    %178 = vector.load %arg6[%c1_58, %c0_59, %c0_60] : memref<2x10x64xf32, #tpu.memory_space<vmem>>, vector<1x10x64xf32>
    %179 = vector.shape_cast %178 : vector<1x10x64xf32> to vector<10x64xf32>
    %180 = vector.extract_strided_slice %179 {offsets = [0, 0], sizes = [1, 32], strides = [1, 1]} : vector<10x64xf32> to vector<1x32xf32>
    %181 = vector.extract_strided_slice %179 {offsets = [1, 0], sizes = [1, 32], strides = [1, 1]} : vector<10x64xf32> to vector<1x32xf32>
    %182 = vector.extract_strided_slice %179 {offsets = [2, 0], sizes = [1, 32], strides = [1, 1]} : vector<10x64xf32> to vector<1x32xf32>
    %183 = vector.extract_strided_slice %179 {offsets = [3, 0], sizes = [1, 32], strides = [1, 1]} : vector<10x64xf32> to vector<1x32xf32>
    %184 = vector.extract_strided_slice %179 {offsets = [4, 0], sizes = [1, 32], strides = [1, 1]} : vector<10x64xf32> to vector<1x32xf32>
    %185 = vector.extract_strided_slice %179 {offsets = [5, 0], sizes = [1, 32], strides = [1, 1]} : vector<10x64xf32> to vector<1x32xf32>
    %186 = vector.extract_strided_slice %179 {offsets = [6, 0], sizes = [1, 32], strides = [1, 1]} : vector<10x64xf32> to vector<1x32xf32>
    %187 = vector.extract_strided_slice %179 {offsets = [7, 0], sizes = [1, 32], strides = [1, 1]} : vector<10x64xf32> to vector<1x32xf32>
    %188 = vector.extract_strided_slice %179 {offsets = [8, 0], sizes = [1, 32], strides = [1, 1]} : vector<10x64xf32> to vector<1x32xf32>
    %189 = vector.extract_strided_slice %179 {offsets = [9, 0], sizes = [1, 64], strides = [1, 1]} : vector<10x64xf32> to vector<1x64xf32>
    %cst_61 = arith.constant dense<0.000000e+00> : vector<16xf32>
    %190 = vector.multi_reduction <add>, %169, %cst_61 [1] : vector<16x32xf32> to vector<16xf32>
    %191 = vector.shape_cast %190 : vector<16xf32> to vector<16x1xf32>
    %cst_62 = arith.constant 3.200000e+01 : f32
    %192 = vector.broadcast %cst_62 : f32 to vector<16x1xf32>
    %193 = arith.divf %191, %192 : vector<16x1xf32>
    %194 = vector.broadcast %193 : vector<16x1xf32> to vector<16x32xf32>
    %195 = arith.subf %169, %194 : vector<16x32xf32>
    %196 = arith.mulf %195, %195 : vector<16x32xf32>
    %cst_63 = arith.constant dense<0.000000e+00> : vector<16xf32>
    %197 = vector.multi_reduction <add>, %196, %cst_63 [1] : vector<16x32xf32> to vector<16xf32>
    %198 = vector.shape_cast %197 : vector<16xf32> to vector<16x1xf32>
    %cst_64 = arith.constant 3.200000e+01 : f32
    %199 = vector.broadcast %cst_64 : f32 to vector<16x1xf32>
    %200 = arith.divf %198, %199 : vector<16x1xf32>
    %cst_65 = arith.constant 9.99999974E-6 : f32
    %201 = vector.broadcast %cst_65 : f32 to vector<16x1xf32>
    %202 = arith.addf %200, %201 : vector<16x1xf32>
    %203 = math.rsqrt %202 : vector<16x1xf32>
    %204 = vector.broadcast %203 : vector<16x1xf32> to vector<16x32xf32>
    %205 = arith.mulf %195, %204 : vector<16x32xf32>
    %206 = vector.broadcast %184 : vector<1x32xf32> to vector<16x32xf32>
    %207 = arith.mulf %205, %206 : vector<16x32xf32>
    %208 = vector.broadcast %185 : vector<1x32xf32> to vector<16x32xf32>
    %209 = arith.addf %207, %208 : vector<16x32xf32>
    %210 = arith.truncf %209 : vector<16x32xf32> to vector<16x32xbf16>
    %cst_66 = arith.constant dense<0.000000e+00> : vector<16x96xf32>
    %211 = tpu.matmul %210, %171, %cst_66 {dimension_numbers = #tpu.dot_dimension_numbers<[1], [0], [0], [1], [0, 0, 1, 1], [], []>} : vector<16x32xbf16>, vector<32x96xbf16>, vector<16x96xf32> -> vector<16x96xf32>
    %212 = vector.extract_strided_slice %211 {offsets = [0, 0], sizes = [16, 32], strides = [1, 1]} : vector<16x96xf32> to vector<16x32xf32>
    %213 = vector.broadcast %180 : vector<1x32xf32> to vector<16x32xf32>
    %214 = arith.addf %212, %213 : vector<16x32xf32>
    %215 = vector.shape_cast %214 : vector<16x32xf32> to vector<2x8x32xf32>
    %216 = vector.extract_strided_slice %211 {offsets = [0, 32], sizes = [16, 32], strides = [1, 1]} : vector<16x96xf32> to vector<16x32xf32>
    %217 = vector.broadcast %181 : vector<1x32xf32> to vector<16x32xf32>
    %218 = arith.addf %216, %217 : vector<16x32xf32>
    %219 = vector.shape_cast %218 : vector<16x32xf32> to vector<2x8x32xf32>
    %220 = vector.extract_strided_slice %211 {offsets = [0, 64], sizes = [16, 32], strides = [1, 1]} : vector<16x96xf32> to vector<16x32xf32>
    %221 = vector.broadcast %182 : vector<1x32xf32> to vector<16x32xf32>
    %222 = arith.addf %220, %221 : vector<16x32xf32>
    %223 = vector.shape_cast %222 : vector<16x32xf32> to vector<2x8x32xf32>
    %224 = vector.extract_strided_slice %215 {offsets = [0, 0, 0], sizes = [2, 8, 8], strides = [1, 1, 1]} : vector<2x8x32xf32> to vector<2x8x8xf32>
    %225 = arith.truncf %224 : vector<2x8x8xf32> to vector<2x8x8xbf16>
    %226 = vector.extract_strided_slice %219 {offsets = [0, 0, 0], sizes = [2, 8, 8], strides = [1, 1, 1]} : vector<2x8x32xf32> to vector<2x8x8xf32>
    %227 = arith.truncf %226 : vector<2x8x8xf32> to vector<2x8x8xbf16>
    %228 = vector.extract_strided_slice %223 {offsets = [0, 0, 0], sizes = [2, 8, 8], strides = [1, 1, 1]} : vector<2x8x32xf32> to vector<2x8x8xf32>
    %229 = arith.truncf %228 : vector<2x8x8xf32> to vector<2x8x8xbf16>
    "tpu.trace_start"() <{level = 10 : i32, message = "bqd,bkd->bqk"}> : () -> ()
    %cst_67 = arith.constant dense<0.000000e+00> : vector<2x8x8xf32>
    %230 = tpu.matmul %225, %227, %cst_67 {dimension_numbers = #tpu.dot_dimension_numbers<[2], [2], [1], [1], [0, 0, 0, 1, 1, 1], [0], [0]>} : vector<2x8x8xbf16>, vector<2x8x8xbf16>, vector<2x8x8xf32> -> vector<2x8x8xf32>
    "tpu.trace_stop"() : () -> ()
    %cst_68 = arith.constant dense<0xFF800000> : vector<2x8xf32>
    %231 = vector.multi_reduction <maximumf>, %230, %cst_68 [2] : vector<2x8x8xf32> to vector<2x8xf32>
    %232 = vector.shape_cast %231 : vector<2x8xf32> to vector<2x8x1xf32>
    %233 = vector.broadcast %232 : vector<2x8x1xf32> to vector<2x8x8xf32>
    %234 = arith.subf %230, %233 : vector<2x8x8xf32>
    %235 = math.exp %234 : vector<2x8x8xf32>
    %cst_69 = arith.constant dense<0.000000e+00> : vector<2x8xf32>
    %236 = vector.multi_reduction <add>, %235, %cst_69 [2] : vector<2x8x8xf32> to vector<2x8xf32>
    %237 = vector.shape_cast %236 : vector<2x8xf32> to vector<2x8x1xf32>
    %238 = tpu.reciprocal %237 : vector<2x8x1xf32> -> vector<2x8x1xf32>
    %239 = vector.broadcast %238 : vector<2x8x1xf32> to vector<2x8x8xf32>
    %240 = arith.mulf %235, %239 : vector<2x8x8xf32>
    %241 = arith.truncf %240 : vector<2x8x8xf32> to vector<2x8x8xbf16>
    "tpu.trace_start"() <{level = 10 : i32, message = "bqk,bkd->bqd"}> : () -> ()
    %cst_70 = arith.constant dense<0.000000e+00> : vector<2x8x8xf32>
    %242 = tpu.matmul %241, %229, %cst_70 {dimension_numbers = #tpu.dot_dimension_numbers<[2], [1], [1], [2], [0, 0, 0, 1, 1, 2], [0], [0]>} : vector<2x8x8xbf16>, vector<2x8x8xbf16>, vector<2x8x8xf32> -> vector<2x8x8xf32>
    "tpu.trace_stop"() : () -> ()
    %243 = vector.extract_strided_slice %215 {offsets = [0, 0, 8], sizes = [2, 8, 8], strides = [1, 1, 1]} : vector<2x8x32xf32> to vector<2x8x8xf32>
    %244 = arith.truncf %243 : vector<2x8x8xf32> to vector<2x8x8xbf16>
    %245 = vector.extract_strided_slice %219 {offsets = [0, 0, 8], sizes = [2, 8, 8], strides = [1, 1, 1]} : vector<2x8x32xf32> to vector<2x8x8xf32>
    %246 = arith.truncf %245 : vector<2x8x8xf32> to vector<2x8x8xbf16>
    %247 = vector.extract_strided_slice %223 {offsets = [0, 0, 8], sizes = [2, 8, 8], strides = [1, 1, 1]} : vector<2x8x32xf32> to vector<2x8x8xf32>
    %248 = arith.truncf %247 : vector<2x8x8xf32> to vector<2x8x8xbf16>
    "tpu.trace_start"() <{level = 10 : i32, message = "bqd,bkd->bqk"}> : () -> ()
    %cst_71 = arith.constant dense<0.000000e+00> : vector<2x8x8xf32>
    %249 = tpu.matmul %244, %246, %cst_71 {dimension_numbers = #tpu.dot_dimension_numbers<[2], [2], [1], [1], [0, 0, 0, 1, 1, 1], [0], [0]>} : vector<2x8x8xbf16>, vector<2x8x8xbf16>, vector<2x8x8xf32> -> vector<2x8x8xf32>
    "tpu.trace_stop"() : () -> ()
    %cst_72 = arith.constant dense<0xFF800000> : vector<2x8xf32>
    %250 = vector.multi_reduction <maximumf>, %249, %cst_72 [2] : vector<2x8x8xf32> to vector<2x8xf32>
    %251 = vector.shape_cast %250 : vector<2x8xf32> to vector<2x8x1xf32>
    %252 = vector.broadcast %251 : vector<2x8x1xf32> to vector<2x8x8xf32>
    %253 = arith.subf %249, %252 : vector<2x8x8xf32>
    %254 = math.exp %253 : vector<2x8x8xf32>
    %cst_73 = arith.constant dense<0.000000e+00> : vector<2x8xf32>
    %255 = vector.multi_reduction <add>, %254, %cst_73 [2] : vector<2x8x8xf32> to vector<2x8xf32>
    %256 = vector.shape_cast %255 : vector<2x8xf32> to vector<2x8x1xf32>
    %257 = tpu.reciprocal %256 : vector<2x8x1xf32> -> vector<2x8x1xf32>
    %258 = vector.broadcast %257 : vector<2x8x1xf32> to vector<2x8x8xf32>
    %259 = arith.mulf %254, %258 : vector<2x8x8xf32>
    %260 = arith.truncf %259 : vector<2x8x8xf32> to vector<2x8x8xbf16>
    "tpu.trace_start"() <{level = 10 : i32, message = "bqk,bkd->bqd"}> : () -> ()
    %cst_74 = arith.constant dense<0.000000e+00> : vector<2x8x8xf32>
    %261 = tpu.matmul %260, %248, %cst_74 {dimension_numbers = #tpu.dot_dimension_numbers<[2], [1], [1], [2], [0, 0, 0, 1, 1, 2], [0], [0]>} : vector<2x8x8xbf16>, vector<2x8x8xbf16>, vector<2x8x8xf32> -> vector<2x8x8xf32>
    "tpu.trace_stop"() : () -> ()
    %262 = vector.extract_strided_slice %215 {offsets = [0, 0, 16], sizes = [2, 8, 8], strides = [1, 1, 1]} : vector<2x8x32xf32> to vector<2x8x8xf32>
    %263 = arith.truncf %262 : vector<2x8x8xf32> to vector<2x8x8xbf16>
    %264 = vector.extract_strided_slice %219 {offsets = [0, 0, 16], sizes = [2, 8, 8], strides = [1, 1, 1]} : vector<2x8x32xf32> to vector<2x8x8xf32>
    %265 = arith.truncf %264 : vector<2x8x8xf32> to vector<2x8x8xbf16>
    %266 = vector.extract_strided_slice %223 {offsets = [0, 0, 16], sizes = [2, 8, 8], strides = [1, 1, 1]} : vector<2x8x32xf32> to vector<2x8x8xf32>
    %267 = arith.truncf %266 : vector<2x8x8xf32> to vector<2x8x8xbf16>
    "tpu.trace_start"() <{level = 10 : i32, message = "bqd,bkd->bqk"}> : () -> ()
    %cst_75 = arith.constant dense<0.000000e+00> : vector<2x8x8xf32>
    %268 = tpu.matmul %263, %265, %cst_75 {dimension_numbers = #tpu.dot_dimension_numbers<[2], [2], [1], [1], [0, 0, 0, 1, 1, 1], [0], [0]>} : vector<2x8x8xbf16>, vector<2x8x8xbf16>, vector<2x8x8xf32> -> vector<2x8x8xf32>
    "tpu.trace_stop"() : () -> ()
    %cst_76 = arith.constant dense<0xFF800000> : vector<2x8xf32>
    %269 = vector.multi_reduction <maximumf>, %268, %cst_76 [2] : vector<2x8x8xf32> to vector<2x8xf32>
    %270 = vector.shape_cast %269 : vector<2x8xf32> to vector<2x8x1xf32>
    %271 = vector.broadcast %270 : vector<2x8x1xf32> to vector<2x8x8xf32>
    %272 = arith.subf %268, %271 : vector<2x8x8xf32>
    %273 = math.exp %272 : vector<2x8x8xf32>
    %cst_77 = arith.constant dense<0.000000e+00> : vector<2x8xf32>
    %274 = vector.multi_reduction <add>, %273, %cst_77 [2] : vector<2x8x8xf32> to vector<2x8xf32>
    %275 = vector.shape_cast %274 : vector<2x8xf32> to vector<2x8x1xf32>
    %276 = tpu.reciprocal %275 : vector<2x8x1xf32> -> vector<2x8x1xf32>
    %277 = vector.broadcast %276 : vector<2x8x1xf32> to vector<2x8x8xf32>
    %278 = arith.mulf %273, %277 : vector<2x8x8xf32>
    %279 = arith.truncf %278 : vector<2x8x8xf32> to vector<2x8x8xbf16>
    "tpu.trace_start"() <{level = 10 : i32, message = "bqk,bkd->bqd"}> : () -> ()
    %cst_78 = arith.constant dense<0.000000e+00> : vector<2x8x8xf32>
    %280 = tpu.matmul %279, %267, %cst_78 {dimension_numbers = #tpu.dot_dimension_numbers<[2], [1], [1], [2], [0, 0, 0, 1, 1, 2], [0], [0]>} : vector<2x8x8xbf16>, vector<2x8x8xbf16>, vector<2x8x8xf32> -> vector<2x8x8xf32>
    "tpu.trace_stop"() : () -> ()
    %281 = vector.extract_strided_slice %215 {offsets = [0, 0, 24], sizes = [2, 8, 8], strides = [1, 1, 1]} : vector<2x8x32xf32> to vector<2x8x8xf32>
    %282 = arith.truncf %281 : vector<2x8x8xf32> to vector<2x8x8xbf16>
    %283 = vector.extract_strided_slice %219 {offsets = [0, 0, 24], sizes = [2, 8, 8], strides = [1, 1, 1]} : vector<2x8x32xf32> to vector<2x8x8xf32>
    %284 = arith.truncf %283 : vector<2x8x8xf32> to vector<2x8x8xbf16>
    %285 = vector.extract_strided_slice %223 {offsets = [0, 0, 24], sizes = [2, 8, 8], strides = [1, 1, 1]} : vector<2x8x32xf32> to vector<2x8x8xf32>
    %286 = arith.truncf %285 : vector<2x8x8xf32> to vector<2x8x8xbf16>
    "tpu.trace_start"() <{level = 10 : i32, message = "bqd,bkd->bqk"}> : () -> ()
    %cst_79 = arith.constant dense<0.000000e+00> : vector<2x8x8xf32>
    %287 = tpu.matmul %282, %284, %cst_79 {dimension_numbers = #tpu.dot_dimension_numbers<[2], [2], [1], [1], [0, 0, 0, 1, 1, 1], [0], [0]>} : vector<2x8x8xbf16>, vector<2x8x8xbf16>, vector<2x8x8xf32> -> vector<2x8x8xf32>
    "tpu.trace_stop"() : () -> ()
    %cst_80 = arith.constant dense<0xFF800000> : vector<2x8xf32>
    %288 = vector.multi_reduction <maximumf>, %287, %cst_80 [2] : vector<2x8x8xf32> to vector<2x8xf32>
    %289 = vector.shape_cast %288 : vector<2x8xf32> to vector<2x8x1xf32>
    %290 = vector.broadcast %289 : vector<2x8x1xf32> to vector<2x8x8xf32>
    %291 = arith.subf %287, %290 : vector<2x8x8xf32>
    %292 = math.exp %291 : vector<2x8x8xf32>
    %cst_81 = arith.constant dense<0.000000e+00> : vector<2x8xf32>
    %293 = vector.multi_reduction <add>, %292, %cst_81 [2] : vector<2x8x8xf32> to vector<2x8xf32>
    %294 = vector.shape_cast %293 : vector<2x8xf32> to vector<2x8x1xf32>
    %295 = tpu.reciprocal %294 : vector<2x8x1xf32> -> vector<2x8x1xf32>
    %296 = vector.broadcast %295 : vector<2x8x1xf32> to vector<2x8x8xf32>
    %297 = arith.mulf %292, %296 : vector<2x8x8xf32>
    %298 = arith.truncf %297 : vector<2x8x8xf32> to vector<2x8x8xbf16>
    "tpu.trace_start"() <{level = 10 : i32, message = "bqk,bkd->bqd"}> : () -> ()
    %cst_82 = arith.constant dense<0.000000e+00> : vector<2x8x8xf32>
    %299 = tpu.matmul %298, %286, %cst_82 {dimension_numbers = #tpu.dot_dimension_numbers<[2], [1], [1], [2], [0, 0, 0, 1, 1, 2], [0], [0]>} : vector<2x8x8xbf16>, vector<2x8x8xbf16>, vector<2x8x8xf32> -> vector<2x8x8xf32>
    "tpu.trace_stop"() : () -> ()
    %300 = tpu.concatenate %242, %261, %280, %299 in 2 : vector<2x8x8xf32>, vector<2x8x8xf32>, vector<2x8x8xf32>, vector<2x8x8xf32> -> vector<2x8x32xf32>
    %301 = vector.shape_cast %300 : vector<2x8x32xf32> to vector<16x32xf32>
    %302 = arith.truncf %301 : vector<16x32xf32> to vector<16x32xbf16>
    %cst_83 = arith.constant dense<0.000000e+00> : vector<16x32xf32>
    %303 = tpu.matmul %302, %173, %cst_83 {dimension_numbers = #tpu.dot_dimension_numbers<[1], [0], [0], [1], [0, 0, 1, 1], [], []>} : vector<16x32xbf16>, vector<32x32xbf16>, vector<16x32xf32> -> vector<16x32xf32>
    %304 = arith.addf %169, %303 : vector<16x32xf32>
    %305 = vector.broadcast %183 : vector<1x32xf32> to vector<16x32xf32>
    %306 = arith.addf %304, %305 : vector<16x32xf32>
    %cst_84 = arith.constant dense<0.000000e+00> : vector<16xf32>
    %307 = vector.multi_reduction <add>, %306, %cst_84 [1] : vector<16x32xf32> to vector<16xf32>
    %308 = vector.shape_cast %307 : vector<16xf32> to vector<16x1xf32>
    %cst_85 = arith.constant 3.200000e+01 : f32
    %309 = vector.broadcast %cst_85 : f32 to vector<16x1xf32>
    %310 = arith.divf %308, %309 : vector<16x1xf32>
    %311 = vector.broadcast %310 : vector<16x1xf32> to vector<16x32xf32>
    %312 = arith.subf %306, %311 : vector<16x32xf32>
    %313 = arith.mulf %312, %312 : vector<16x32xf32>
    %cst_86 = arith.constant dense<0.000000e+00> : vector<16xf32>
    %314 = vector.multi_reduction <add>, %313, %cst_86 [1] : vector<16x32xf32> to vector<16xf32>
    %315 = vector.shape_cast %314 : vector<16xf32> to vector<16x1xf32>
    %cst_87 = arith.constant 3.200000e+01 : f32
    %316 = vector.broadcast %cst_87 : f32 to vector<16x1xf32>
    %317 = arith.divf %315, %316 : vector<16x1xf32>
    %cst_88 = arith.constant 9.99999974E-6 : f32
    %318 = vector.broadcast %cst_88 : f32 to vector<16x1xf32>
    %319 = arith.addf %317, %318 : vector<16x1xf32>
    %320 = math.rsqrt %319 : vector<16x1xf32>
    %321 = vector.broadcast %320 : vector<16x1xf32> to vector<16x32xf32>
    %322 = arith.mulf %312, %321 : vector<16x32xf32>
    %323 = vector.broadcast %186 : vector<1x32xf32> to vector<16x32xf32>
    %324 = arith.mulf %322, %323 : vector<16x32xf32>
    %325 = vector.broadcast %187 : vector<1x32xf32> to vector<16x32xf32>
    %326 = arith.addf %324, %325 : vector<16x32xf32>
    %327 = arith.truncf %326 : vector<16x32xf32> to vector<16x32xbf16>
    %cst_89 = arith.constant dense<0.000000e+00> : vector<16x64xf32>
    %328 = tpu.matmul %327, %175, %cst_89 {dimension_numbers = #tpu.dot_dimension_numbers<[1], [0], [0], [1], [0, 0, 1, 1], [], []>} : vector<16x32xbf16>, vector<32x64xbf16>, vector<16x64xf32> -> vector<16x64xf32>
    %329 = vector.broadcast %189 : vector<1x64xf32> to vector<16x64xf32>
    %330 = arith.addf %328, %329 : vector<16x64xf32>
    %cst_90 = arith.constant 0.000000e+00 : f32
    %331 = vector.broadcast %cst_90 : f32 to vector<16x64xf32>
    %332 = arith.maximumf %330, %331 : vector<16x64xf32>
    %333 = arith.truncf %332 : vector<16x64xf32> to vector<16x64xbf16>
    %cst_91 = arith.constant dense<0.000000e+00> : vector<16x32xf32>
    %334 = tpu.matmul %333, %177, %cst_91 {dimension_numbers = #tpu.dot_dimension_numbers<[1], [0], [0], [1], [0, 0, 1, 1], [], []>} : vector<16x64xbf16>, vector<64x32xbf16>, vector<16x32xf32> -> vector<16x32xf32>
    %335 = vector.broadcast %188 : vector<1x32xf32> to vector<16x32xf32>
    %336 = arith.addf %334, %335 : vector<16x32xf32>
    %337 = arith.addf %306, %336 : vector<16x32xf32>
    %338 = vector.shape_cast %337 : vector<16x32xf32> to vector<2x8x32xf32>
    %c0_92 = arith.constant 0 : index
    %c0_93 = arith.constant 0 : index
    %c0_94 = arith.constant 0 : index
    %339 = vector.load %arg7[%c0_92, %c0_93, %c0_94] : memref<2x8x32xf32, #tpu.memory_space<vmem>>, vector<2x8x32xf32>
    tpu.vector_store %arg7[%c0_92, %c0_93, %c0_94], %338 {strides = array<i32>} : memref<2x8x32xf32, #tpu.memory_space<vmem>>, vector<2x8x32xf32>,
    return
  }
  func.func @transform_0(%arg0: i32) -> (i32, i32, i32) {
    %c0_i32 = arith.constant 0 : i32
    %c0_i32_0 = arith.constant 0 : i32
    %c0_i32_1 = arith.constant 0 : i32
    return %arg0, %c0_i32, %c0_i32_0 : i32, i32, i32
  }
  func.func @transform_1(%arg0: i32) -> (i32, i32, i32) {
    %c0_i32 = arith.constant 0 : i32
    %c0_i32_0 = arith.constant 0 : i32
    %c0_i32_1 = arith.constant 0 : i32
    %c0_i32_2 = arith.constant 0 : i32
    return %c0_i32, %c0_i32_0, %c0_i32_1 : i32, i32, i32
  }
  func.func @transform_2(%arg0: i32) -> (i32, i32, i32) {
    %c0_i32 = arith.constant 0 : i32
    %c0_i32_0 = arith.constant 0 : i32
    %c0_i32_1 = arith.constant 0 : i32
    %c0_i32_2 = arith.constant 0 : i32
    return %c0_i32, %c0_i32_0, %c0_i32_1 : i32, i32, i32
  }
  func.func @transform_3(%arg0: i32) -> (i32, i32, i32) {
    %c0_i32 = arith.constant 0 : i32
    %c0_i32_0 = arith.constant 0 : i32
    %c0_i32_1 = arith.constant 0 : i32
    %c0_i32_2 = arith.constant 0 : i32
    return %c0_i32, %c0_i32_0, %c0_i32_1 : i32, i32, i32
  }
  func.func @transform_4(%arg0: i32) -> (i32, i32, i32) {
    %c0_i32 = arith.constant 0 : i32
    %c0_i32_0 = arith.constant 0 : i32
    %c0_i32_1 = arith.constant 0 : i32
    %c0_i32_2 = arith.constant 0 : i32
    return %c0_i32, %c0_i32_0, %c0_i32_1 : i32, i32, i32
  }
  func.func @transform_5(%arg0: i32) -> (i32, i32, i32) {
    %c0_i32 = arith.constant 0 : i32
    %c0_i32_0 = arith.constant 0 : i32
    %c0_i32_1 = arith.constant 0 : i32
    %c0_i32_2 = arith.constant 0 : i32
    return %c0_i32, %c0_i32_0, %c0_i32_1 : i32, i32, i32
  }
  func.func @transform_6(%arg0: i32) -> (i32, i32, i32) {
    %c0_i32 = arith.constant 0 : i32
    %c0_i32_0 = arith.constant 0 : i32
    %c0_i32_1 = arith.constant 0 : i32
    return %arg0, %c0_i32, %c0_i32_0 : i32, i32, i32
  }
}

</mosaic_0001>

<llo_original>
// kernel: tpu_custom_call.1
$region0: #{tpu_custom_call.1}
  #allocation0 [shape = 'u32[]', space=smem, size = 0x4, offset = 0x4, fixed_abs, tag = 'smem constant byte address 0x4 - core index']
  #allocation1 [shape = 'u32[72,128]{1,0:T(1,128)}', space=vmem, size = 0x9000, scoped, tag = 'internal scratch']
  %s0 = inlined_call_operand.vmem [shape: f32[4,8,32], index: 0, kind: input, shape index: {}]
  %s1 = inlined_call_operand.vmem [shape: bf16[2,32,96], index: 1, kind: input, shape index: {}]
  %s2 = inlined_call_operand.vmem [shape: bf16[2,32,32], index: 2, kind: input, shape index: {}]
  %s3 = inlined_call_operand.hbm [shape: bf16[2,32,64], index: 3, kind: input, shape index: {}]
  %s4 = inlined_call_operand.vmem [shape: bf16[2,64,32], index: 4, kind: input, shape index: {}]
  %s5 = inlined_call_operand.vmem [shape: f32[2,10,64], index: 5, kind: input, shape index: {}]
  %s6 = inlined_call_operand.hbm [shape: f32[4,8,32], index: 6, kind: output, shape index: {}]
  %s7 = sld [smem:[#allocation0]]
  $region61: #{tpu_custom_call.1} parent=0
    _
  %s9 = ssub.s32 1, %s7
  %s10 = scalar_select 0, %s9, %s7
  $region1: #{tpu_custom_call.1} parent=0
    #allocation2 [shape = 'u8[16384]{0}', space=vmem, size = 0x4000, scoped, tag = 'input window, operand 3, single buffered']
    #allocation3 [shape = 's32[2]{0}', space=sflag, size = 0x8, scoped, tag = 'scoped memory for tpu_custom_call.1']
    #allocation4 [shape = 's32[2]{0}', space=sflag, size = 0x8, scoped, tag = 'scoped memory for tpu_custom_call.1']
    #allocation5 [shape = 'u8[16384]{0}', space=vmem, size = 0x4000, scoped, tag = 'output window, operand 0']
    %11 = vsyncpa [#allocation3], 0
    %12 = vsyncpa [#allocation4], 0
    %s13 = scalar_lea.sflag [#allocation4], 1
    %14 = vsyncpa %s13, 0
    loop: start=0, step=1, limit=4
    $region2: #{tpu_custom_call.1} parent=1 // loop_pre_header
      _
    $region3: #{tpu_custom_call.1} parent=1 // loop_header
      %s16 = sphi 0, %s20
      %p17 = scmp.ge.s32.totalorder %s16, 4
      %s26 = sphi 0, %s28
      %s29 = sphi 0, %s26
      %s30 = sphi 0, %s29
      %s46 = sphi 0, %s30
      %s50 = sphi 0, %s50
      %s52 = sphi 0, %s50
      %s53 = sphi 0, %s52
      %s67 = sphi 0, %s53
      %s71 = sphi 0, %s71
      %s73 = sphi 0, %s71
      %s74 = sphi 0, %s73
      %s88 = sphi 0, %s74
      %s92 = sphi 0, %s92
      %s94 = sphi 0, %s92
      %s95 = sphi 0, %s94
      %s109 = sphi 0, %s95
      %s113 = sphi 0, %s113
      %s115 = sphi 0, %s113
      %s116 = sphi 0, %s115
      %s130 = sphi 0, %s116
      %s134 = sphi 0, %s134
      %s136 = sphi 0, %s134
      %s137 = sphi 0, %s136
      %s151 = sphi 0, %s137
      %s157 = sphi 0, %s159
      %s160 = sphi 0, %s157
      %s161 = sphi 0, %s160
      %s177 = sphi 0, %s161
    $region4: #{tpu_custom_call.1} parent=1 // loop_header_branch
      %19 = sbr.rel (%p17) target = $region8
    $region5: #{tpu_custom_call.1} parent=1 // loop_body
      %s21 = ssub.s32 %s16, 1
      %s22 = ssub.s32 %s16, 2
      %s23 = sadd.s32 %s16, 1
      %s24 = ssub.s32 %s16, %s23
      %p25 = scmp.eq.s32.totalorder %s24, 0
      %s27 = sadd.s32 %s26, 1
      %s28 = scalar_select %p25, %s26, %s27
      %p31 = pneg %p25
      %p32 = scmp.eq.s32.totalorder %s16, 1
      %p33 = por %p31, %p32
      %p34 = scmp.ne.s32.totalorder %s26, %s29
      %p35 = scmp.eq.s32.totalorder %s16, 0
      %p36 = por %p34, %p35
      %p37 = scmp.ne.s32.totalorder %s26, %s29
      %p38 = scmp.eq.s32.totalorder %s21, 1
      %p39 = por %p37, %p38
      %p40 = scmp.ne.s32.totalorder %s29, %s30
      %p41 = scmp.eq.s32.totalorder %s21, 0
      %p42 = por %p40, %p41
      %p43 = scmp.ne.s32.totalorder %s29, %s30
      %p44 = scmp.eq.s32.totalorder %s22, 1
      %p45 = por %p43, %p44
      %p47 = scmp.ne.s32.totalorder %s30, %s46
      %p48 = scmp.eq.s32.totalorder %s22, 0
      %p49 = por %p47, %p48
      %s51 = sadd.s32 %s50, 1
      %p54 = scmp.eq.s32.totalorder %s16, 1
      %p55 = scmp.ne.s32.totalorder %s50, %s52
      %p56 = scmp.eq.s32.totalorder %s16, 0
      %p57 = por %p55, %p56
      %p58 = scmp.ne.s32.totalorder %s50, %s52
      %p59 = scmp.eq.s32.totalorder %s21, 1
      %p60 = por %p58, %p59
      %p61 = scmp.ne.s32.totalorder %s52, %s53
      %p62 = scmp.eq.s32.totalorder %s21, 0
      %p63 = por %p61, %p62
      %p64 = scmp.ne.s32.totalorder %s52, %s53
      %p65 = scmp.eq.s32.totalorder %s22, 1
      %p66 = por %p64, %p65
      %p68 = scmp.ne.s32.totalorder %s53, %s67
      %p69 = scmp.eq.s32.totalorder %s22, 0
      %p70 = por %p68, %p69
      %s72 = sadd.s32 %s71, 1
      %p75 = scmp.eq.s32.totalorder %s16, 1
      %p76 = scmp.ne.s32.totalorder %s71, %s73
      %p77 = scmp.eq.s32.totalorder %s16, 0
      %p78 = por %p76, %p77
      %p79 = scmp.ne.s32.totalorder %s71, %s73
      %p80 = scmp.eq.s32.totalorder %s21, 1
      %p81 = por %p79, %p80
      %p82 = scmp.ne.s32.totalorder %s73, %s74
      %p83 = scmp.eq.s32.totalorder %s21, 0
      %p84 = por %p82, %p83
      %p85 = scmp.ne.s32.totalorder %s73, %s74
      %p86 = scmp.eq.s32.totalorder %s22, 1
      %p87 = por %p85, %p86
      %p89 = scmp.ne.s32.totalorder %s74, %s88
      %p90 = scmp.eq.s32.totalorder %s22, 0
      %p91 = por %p89, %p90
      %s93 = sadd.s32 %s92, 1
      %p96 = scmp.eq.s32.totalorder %s16, 1
      %p97 = scmp.ne.s32.totalorder %s92, %s94
      %p98 = scmp.eq.s32.totalorder %s16, 0
      %p99 = por %p97, %p98
      %p100 = scmp.ne.s32.totalorder %s92, %s94
      %p101 = scmp.eq.s32.totalorder %s21, 1
      %p102 = por %p100, %p101
      %p103 = scmp.ne.s32.totalorder %s94, %s95
      %p104 = scmp.eq.s32.totalorder %s21, 0
      %p105 = por %p103, %p104
      %p106 = scmp.ne.s32.totalorder %s94, %s95
      %p107 = scmp.eq.s32.totalorder %s22, 1
      %p108 = por %p106, %p107
      %p110 = scmp.ne.s32.totalorder %s95, %s109
      %p111 = scmp.eq.s32.totalorder %s22, 0
      %p112 = por %p110, %p111
      %s114 = sadd.s32 %s113, 1
      %p117 = scmp.eq.s32.totalorder %s16, 1
      %p118 = scmp.ne.s32.totalorder %s113, %s115
      %p119 = scmp.eq.s32.totalorder %s16, 0
      %p120 = por %p118, %p119
      %p121 = scmp.ne.s32.totalorder %s113, %s115
      %p122 = scmp.eq.s32.totalorder %s21, 1
      %p123 = por %p121, %p122
      %p124 = scmp.ne.s32.totalorder %s115, %s116
      %p125 = scmp.eq.s32.totalorder %s21, 0
      %p126 = por %p124, %p125
      %p127 = scmp.ne.s32.totalorder %s115, %s116
      %p128 = scmp.eq.s32.totalorder %s22, 1
      %p129 = por %p127, %p128
      %p131 = scmp.ne.s32.totalorder %s116, %s130
      %p132 = scmp.eq.s32.totalorder %s22, 0
      %p133 = por %p131, %p132
      %s135 = sadd.s32 %s134, 1
      %p138 = scmp.eq.s32.totalorder %s16, 1
      %p139 = scmp.ne.s32.totalorder %s134, %s136
      %p140 = scmp.eq.s32.totalorder %s16, 0
      %p141 = por %p139, %p140
      %p142 = scmp.ne.s32.totalorder %s134, %s136
      %p143 = scmp.eq.s32.totalorder %s21, 1
      %p144 = por %p142, %p143
      %p145 = scmp.ne.s32.totalorder %s136, %s137
      %p146 = scmp.eq.s32.totalorder %s21, 0
      %p147 = por %p145, %p146
      %p148 = scmp.ne.s32.totalorder %s136, %s137
      %p149 = scmp.eq.s32.totalorder %s22, 1
      %p150 = por %p148, %p149
      %p152 = scmp.ne.s32.totalorder %s137, %s151
      %p153 = scmp.eq.s32.totalorder %s22, 0
      %p154 = por %p152, %p153
      %s155 = ssub.s32 %s16, %s23
      %p156 = scmp.eq.s32.totalorder %s155, 0
      %s158 = sadd.s32 %s157, 1
      %s159 = scalar_select %p156, %s157, %s158
      %p162 = pneg %p156
      %p163 = scmp.eq.s32.totalorder %s16, 1
      %p164 = por %p162, %p163
      %p165 = scmp.ne.s32.totalorder %s157, %s160
      %p166 = scmp.eq.s32.totalorder %s16, 0
      %p167 = por %p165, %p166
      %p168 = scmp.ne.s32.totalorder %s157, %s160
      %p169 = scmp.eq.s32.totalorder %s21, 1
      %p170 = por %p168, %p169
      %p171 = scmp.ne.s32.totalorder %s160, %s161
      %p172 = scmp.eq.s32.totalorder %s21, 0
      %p173 = por %p171, %p172
      %p174 = scmp.ne.s32.totalorder %s160, %s161
      %p175 = scmp.eq.s32.totalorder %s22, 1
      %p176 = por %p174, %p175
      %p178 = scmp.ne.s32.totalorder %s161, %s177
      %p179 = scmp.eq.s32.totalorder %s22, 0
      %p180 = por %p178, %p179
      %p181 = scmp.le.s32.totalorder 1, %s16
      %p182 = scmp.lt.s32.totalorder %s16, 3
      %p183 = pnand %p181, %p182
      %p184 = pneg %p183
      // Predicated region
      $region9: #{tpu_custom_call.1} parent=5 // pred_check
        _
      $region10: #{tpu_custom_call.1} parent=5 // pred_check_branch
        %186 = sbr.rel (%p183) target = $region12
      $region11: #{tpu_custom_call.1} parent=5 // pred_region
        %s187 = ssub.s32 %s16, 1
        // Predicated region
        $region13: #{tpu_custom_call.1} parent=11 // pred_check
          %p188 = pneg %p63
        $region14: #{tpu_custom_call.1} parent=11 // pred_check_branch
          %190 = sbr.rel (%p188) target = $region16
        $region15: #{tpu_custom_call.1} parent=11 // pred_region
          _
        $region16: #{tpu_custom_call.1} parent=11 // pred_fallthru
          _
        // Predicated region
        $region17: #{tpu_custom_call.1} parent=11 // pred_check
          %p191 = pneg %p84
        $region18: #{tpu_custom_call.1} parent=11 // pred_check_branch
          %193 = sbr.rel (%p191) target = $region20
        $region19: #{tpu_custom_call.1} parent=11 // pred_region
          _
        $region20: #{tpu_custom_call.1} parent=11 // pred_fallthru
          _
        // Predicated region
        $region21: #{tpu_custom_call.1} parent=11 // pred_check
          %p194 = pneg %p105
        $region22: #{tpu_custom_call.1} parent=11 // pred_check_branch
          %196 = sbr.rel (%p194) target = $region24
        $region23: #{tpu_custom_call.1} parent=11 // pred_region
          %198 = vsyncadd [#allocation3], 0
          %s199 = sshll.u32 %s3, 4
          %s200 = int_to_ptr.hbm [resolvable:$true] %s199
          %s201 = sshll.u32 [#allocation2], 4
          %s202 = int_to_ptr.vmem [resolvable:$true] %s201
          %207 = dma.hbm_to_vmem [thread:$0]  %s200, 512, %s202, [#allocation3], 64, 64, 4
        $region24: #{tpu_custom_call.1} parent=11 // pred_fallthru
          _
        // Predicated region
        $region25: #{tpu_custom_call.1} parent=11 // pred_check
          %p208 = pneg %p126
        $region26: #{tpu_custom_call.1} parent=11 // pred_check_branch
          %210 = sbr.rel (%p208) target = $region28
        $region27: #{tpu_custom_call.1} parent=11 // pred_region
          _
        $region28: #{tpu_custom_call.1} parent=11 // pred_fallthru
          _
        // Predicated region
        $region29: #{tpu_custom_call.1} parent=11 // pred_check
          %p211 = pneg %p147
        $region30: #{tpu_custom_call.1} parent=11 // pred_check_branch
          %213 = sbr.rel (%p211) target = $region32
        $region31: #{tpu_custom_call.1} parent=11 // pred_region
          _
        $region32: #{tpu_custom_call.1} parent=11 // pred_fallthru
          _
      $region12: #{tpu_custom_call.1} parent=5 // pred_fallthru
        _
      %p214 = scmp.lt.s32.totalorder %s16, 2
      // Predicated region
      $region33: #{tpu_custom_call.1} parent=5 // pred_check
        %p215 = pneg %p214
      $region34: #{tpu_custom_call.1} parent=5 // pred_check_branch
        %217 = sbr.rel (%p215) target = $region36
      $region35: #{tpu_custom_call.1} parent=5 // pred_region
        // Predicated region
        $region37: #{tpu_custom_call.1} parent=35 // pred_check
          %p218 = pneg %p36
        $region38: #{tpu_custom_call.1} parent=35 // pred_check_branch
          %220 = sbr.rel (%p218) target = $region40
        $region39: #{tpu_custom_call.1} parent=35 // pred_region
          %s221 = smul.u32 2, %s16
          %p222 = scmp.lt.s32.totalorder %s221, 3
          %s223 = scalar_select %p222, %s221, 3
          %s224 = smul.addr %s223, 8
          %s225 = scalar_lea.vmem %s0, %s224
          %s226 = smul.u32 2, %s16
        $region40: #{tpu_custom_call.1} parent=35 // pred_fallthru
          _
      $region36: #{tpu_custom_call.1} parent=5 // pred_fallthru
        _
      %p227 = scmp.le.s32.totalorder 1, %s16
      %p228 = scmp.lt.s32.totalorder %s16, 3
      %p229 = pnand %p227, %p228
      %p230 = pneg %p229
      // Predicated region
      $region41: #{tpu_custom_call.1} parent=5 // pred_check
        _
      $region42: #{tpu_custom_call.1} parent=5 // pred_check_branch
        %232 = sbr.rel (%p229) target = $region44
      $region43: #{tpu_custom_call.1} parent=5 // pred_region
        %s233 = ssub.s32 %s16, 1
        // Predicated region
        $region45: #{tpu_custom_call.1} parent=43 // pred_check
          %p234 = pneg %p105
        $region46: #{tpu_custom_call.1} parent=43 // pred_check_branch
          %236 = sbr.rel (%p234) target = $region48
        $region47: #{tpu_custom_call.1} parent=43 // pred_region
          %238 = dma.done [#allocation3], 512
        $region48: #{tpu_custom_call.1} parent=43 // pred_fallthru
          _
        %s239 = smul.u32 2, %s21
        %p240 = scmp.lt.s32.totalorder %s239, 3
        %s241 = scalar_select %p240, %s239, 3
        %s242 = smul.addr %s241, 8
        %s243 = scalar_lea.vmem %s0, %s242
        %p244 = pneg %p42
        %p245 = pneg %p39
        %p246 = pneg %p63
        %p247 = pneg %p60
        %p248 = pneg %p84
        %p249 = pneg %p81
        %p250 = pneg %p105
        %p251 = pneg %p102
        %p252 = pneg %p126
        %p253 = pneg %p123
        %p254 = pneg %p147
        %p255 = pneg %p144
        %p256 = pneg %p173
        %p257 = pneg %p170
        %s258 = sand.u32 %s160, 1
        %s259 = scalar_lea.sflag [#allocation4], %s258
        %s260 = sand.u32 %s160, 1
        %s261 = smul.addr %s260, 16
        %s262 = scalar_lea.vmem [#allocation5], %s261
        %s263 = smul.u32 2, %s21
        %p264 = scmp.lt.s32.totalorder %s263, 3
        %s265 = scalar_select %p264, %s263, 3
        %s266 = smul.addr %s265, 8
        %s267 = scalar_lea.vmem %s0, %s266
        %s268 = smul.u32 2, %s21
        %s269 = smul.u32 2, %s21
        %v271 = vld [vmem:[%s267] sm:$0xff]
        %v272 = vld [vmem:[%s267 + $0x8] sm:$0xff]
        %v273 = vld [vmem:[%s1] sm:$0xf]
        %v274 = vld [vmem:[%s1 + $0x4] sm:$0xf]
        %v275 = vld [vmem:[%s1 + $0x8] sm:$0xf]
        %v276 = vld [vmem:[%s1 + $0xc] sm:$0xf]
        %v277 = vld [vmem:[%s2] sm:$0xf]
        %v278 = vld [vmem:[%s2 + $0x4] sm:$0xf]
        %v279 = vld [vmem:[%s2 + $0x8] sm:$0xf]
        %v280 = vld [vmem:[%s2 + $0xc] sm:$0xf]
        %v281 = vld [vmem:[#allocation2] sm:$0xf]
        %v282 = vld [vmem:[#allocation2 + $0x4] sm:$0xf]
        %v283 = vld [vmem:[#allocation2 + $0x8] sm:$0xf]
        %v284 = vld [vmem:[#allocation2 + $0xc] sm:$0xf]
        %v285 = vld [vmem:[%s4] sm:$0xf]
        %v286 = vld [vmem:[%s4 + $0x4] sm:$0xf]
        %v287 = vld [vmem:[%s4 + $0x8] sm:$0xf]
        %v288 = vld [vmem:[%s4 + $0xc] sm:$0xf]
        %v289 = vld [vmem:[%s4 + $0x10] sm:$0xf]
        %v290 = vld [vmem:[%s4 + $0x14] sm:$0xf]
        %v291 = vld [vmem:[%s4 + $0x18] sm:$0xf]
        %v292 = vld [vmem:[%s4 + $0x1c] sm:$0xf]
        %v293 = vld [vmem:[%s5] sm:$0xff]
        %v294 = vld [vmem:[%s5 + $0x8] sm:$0x3]
        %vm295 = vcmask 261120
        %v296 = vsel %vm295, %v271, 0.0
        %297 = vadd.xlane.f32.xlu0 %v296
        %v298 = vpop.xlane.xlu0 %297
        %v299 = vsel %vm295, %v272, 0.0
        %300 = vadd.xlane.f32.xlu0 %v299
        %v301 = vpop.xlane.xlu0 %300
        %v302 = vrcp.pop 32.0
        %v303 = vmul.f32 32.0, %v302
        %v304 = vsub.f32 1.0, %v303
        %v305 = vmul.f32 %v302, %v304
        %v306 = vadd.f32 %v302, %v305
        %vm307 = vweird.f32 %v302
        %v308 = vsel %vm307, %v302, %v306
        %v309 = vmul.f32 %v298, %v308
        %v310 = vmul.f32 %v301, %v308
        %v311 = vsub.f32 %v271, %v309
        %v312 = vsub.f32 %v272, %v310
        %v313 = vmul.f32 %v311, %v311
        %v314 = vmul.f32 %v312, %v312
        %v315 = vsel %vm295, %v313, 0.0
        %316 = vadd.xlane.f32.xlu0 %v315
        %v317 = vpop.xlane.xlu0 %316
        %v318 = vsel %vm295, %v314, 0.0
        %319 = vadd.xlane.f32.xlu0 %v318
        %v320 = vpop.xlane.xlu0 %319
        %v321 = vmul.f32 %v317, %v308
        %v322 = vmul.f32 %v320, %v308
        %v323 = vadd.f32 %v321, 1e-05
        %v324 = vadd.f32 %v322, 1e-05
        %v325 = vrsqrt.pop %v323
        %v326 = vmul.f32 %v325, %v323
        %v327 = vmul.f32 %v326, %v325
        %v328 = vmul.f32 0.5, %v327
        %v329 = vsub.f32 1.5, %v328
        %v330 = vmul.f32 %v325, %v329
        %vm331 = vweird.f32 %v323
        %vm332 = vweird.f32 %v325
        %vm333 = vmor %vm331, %vm332
        %v334 = vsel %vm333, %v325, %v330
        %v335 = vrsqrt.pop %v324
        %v336 = vmul.f32 %v335, %v324
        %v337 = vmul.f32 %v336, %v335
        %v338 = vmul.f32 0.5, %v337
        %v339 = vsub.f32 1.5, %v338
        %v340 = vmul.f32 %v335, %v339
        %vm341 = vweird.f32 %v324
        %vm342 = vweird.f32 %v335
        %vm343 = vmor %vm341, %vm342
        %v344 = vsel %vm343, %v335, %v340
        %v345 = vmul.f32 %v311, %v334
        %v346 = vmul.f32 %v312, %v344
        %v347 = vperm.slane %v293, 4
        %v348 = vmul.f32 %v345, %v347
        %v349 = vmul.f32 %v346, %v347
        %v350 = vperm.slane %v293, 5
        %v351 = vadd.f32 %v348, %v350
        %v352 = vadd.f32 %v349, %v350
        %v353 = vpack.c.bf16 %v352, %v351
        %v358 = vunpack.c.l.b16 %v273
        %v359 = vunpack.c.l.b16 %v274
        %v360 = vunpack.c.l.b16 %v275
        %v361 = vunpack.c.l.b16 %v276
        %v362 = vpack.c.b16 %v359, %v358
        %v363 = vpack.c.b16 %v361, %v360
        %v367 = vsel %vm295, %v353, 0
        %369 = vmatpush.bf16.msra.mxu0 0
        %370 = vmatpush.bf16.msra.mxu0 0
        %371 = vmatpush.bf16.msra.mxu0 0
        %372 = vmatpush.bf16.msra.mxu0 0
        %373 = vmatpush.bf16.msra.mxu0 0
        %374 = vmatpush.bf16.msra.mxu0 0
        %375 = vmatpush.bf16.msra.mxu0 %v363
        %376 = vmatpush.bf16.msra.mxu0 %v362
        %377 = vmatmul.bf16.gmra.mxu0 %v367
        %v378 = vpop.f32.mrf.mxu0
        %v379 = vadd.f32 0.0, %v378
        %v380 = vpop.f32.mrf.mxu0
        %v381 = vadd.f32 0.0, %v380
        %382 = vdwg.mxu0
        %v383 = vperm.slane %v293, 0
        %v384 = vadd.f32 %v379, %v383
        %v385 = vadd.f32 %v381, %v383
        %v386 = vperm.slane %v293, 1
        %388 = vrot.lane.b32.xlu0 %v386, 32
        %v389 = vpop.permute.xlu0 %388
        %v391 = vadd.f32 %v379, %v389
        %v392 = vadd.f32 %v381, %v389
        %v393 = vperm.slane %v293, 2
        %395 = vrot.lane.b32.xlu0 %v393, 64
        %v396 = vpop.permute.xlu0 %395
        %v398 = vadd.f32 %v379, %v396
        %v399 = vadd.f32 %v381, %v396
        %v400 = vpack.c.bf16 %v384, %v384
        %v401 = vpack.c.bf16 %v385, %v385
        %v402 = vpack.c.bf16 %v391, %v391
        %v403 = vpack.c.bf16 %v392, %v392
        %v404 = vpack.c.bf16 %v398, %v398
        %v405 = vpack.c.bf16 %v399, %v399
        %v407 = vunpack.c.l.b16 %v402
        %v408 = vpack.c.b16 %v407, %v407
        %409 = vrot.lane.b32.xlu0 %v408, 96
        %v410 = vpop.permute.xlu0 %409
        %vm411 = vcmask 64512
        %v413 = vsel %vm411, %v400, 0
        %v416 = vsel %vm411, %v410, 0
        %418 = vmatpush.bf16.xpose.msra.mxu0 0
        %419 = vmatpush.bf16.xpose.msra.mxu0 0
        %420 = vmatpush.bf16.xpose.msra.mxu0 0
        %421 = vmatpush.bf16.xpose.msra.mxu0 0
        %422 = vmatpush.bf16.xpose.msra.mxu0 0
        %423 = vmatpush.bf16.xpose.msra.mxu0 0
        %424 = vmatpush.bf16.xpose.msra.mxu0 0
        %425 = vmatpush.bf16.xpose.msra.mxu0 %v416
        %426 = vmatmul.bf16.gmra.mxu0 %v413
        %v427 = vpop.f32.mrf.mxu0
        %v428 = vadd.f32 0.0, %v427
        %v429 = vpop.f32.mrf.mxu0
        %430 = vdwg.mxu0
        %v432 = vunpack.c.l.b16 %v403
        %v433 = vpack.c.b16 %v432, %v432
        %434 = vrot.lane.b32.xlu0 %v433, 96
        %v435 = vpop.permute.xlu0 %434
        %v437 = vsel %vm411, %v401, 0
        %v440 = vsel %vm411, %v435, 0
        %442 = vmatpush.bf16.xpose.msra.mxu0 0
        %443 = vmatpush.bf16.xpose.msra.mxu0 0
        %444 = vmatpush.bf16.xpose.msra.mxu0 0
        %445 = vmatpush.bf16.xpose.msra.mxu0 0
        %446 = vmatpush.bf16.xpose.msra.mxu0 0
        %447 = vmatpush.bf16.xpose.msra.mxu0 0
        %448 = vmatpush.bf16.xpose.msra.mxu0 0
        %449 = vmatpush.bf16.xpose.msra.mxu0 %v440
        %450 = vmatmul.bf16.gmra.mxu0 %v437
        %v451 = vpop.f32.mrf.mxu0
        %v452 = vadd.f32 0.0, %v451
        %v453 = vpop.f32.mrf.mxu0
        %454 = vdwg.mxu0
        %v455 = vsel %vm411, %v428, -inf
        %456 = vmax.xlane.f32.xlu0 %v455
        %v457 = vpop.xlane.xlu0 %456
        %v458 = vsel %vm411, %v452, -inf
        %459 = vmax.xlane.f32.xlu0 %v458
        %v460 = vpop.xlane.xlu0 %459
        %v461 = vsub.f32 %v428, %v457
        %v462 = vsub.f32 %v452, %v460
        %v463 = vmul.f32 %v461, 1.442695
        %v464 = vpow.pop %v463
        %v465 = vmul.f32 %v462, 1.442695
        %v466 = vpow.pop %v465
        %v467 = vsel %vm411, %v464, 0.0
        %468 = vadd.xlane.f32.xlu0 %v467
        %v469 = vpop.xlane.xlu0 %468
        %v470 = vsel %vm411, %v466, 0.0
        %471 = vadd.xlane.f32.xlu0 %v470
        %v472 = vpop.xlane.xlu0 %471
        %v473 = vrcp.pop %v469
        %v474 = vmul.f32 %v469, %v473
        %v475 = vsub.f32 1.0, %v474
        %v476 = vmul.f32 %v473, %v475
        %v477 = vadd.f32 %v473, %v476
        %vm478 = vweird.f32 %v469
        %vm479 = vweird.f32 %v473
        %vm480 = vmor %vm478, %vm479
        %v481 = vsel %vm480, %v473, %v477
        %v482 = vand.u32 2147483647, %v469
        %vm483 = vcmp.eq.f32.partialorder %v482, 8.507059e+37
        %v484 = vand.u32 %v469, 2147483648
        %v485 = vor.u32 1.1754944e-38, %v484
        %v486 = vsel %vm483, %v485, %v481
        %v487 = vrcp.pop %v472
        %v488 = vmul.f32 %v472, %v487
        %v489 = vsub.f32 1.0, %v488
        %v490 = vmul.f32 %v487, %v489
        %v491 = vadd.f32 %v487, %v490
        %vm492 = vweird.f32 %v472
        %vm493 = vweird.f32 %v487
        %vm494 = vmor %vm492, %vm493
        %v495 = vsel %vm494, %v487, %v491
        %v496 = vand.u32 2147483647, %v472
        %vm497 = vcmp.eq.f32.partialorder %v496, 8.507059e+37
        %v498 = vand.u32 %v472, 2147483648
        %v499 = vor.u32 1.1754944e-38, %v498
        %v500 = vsel %vm497, %v499, %v495
        %v501 = vmul.f32 %v464, %v486
        %v502 = vmul.f32 %v466, %v500
        %v503 = vpack.c.bf16 %v501, %v501
        %v504 = vpack.c.bf16 %v502, %v502
        %v506 = vunpack.c.l.b16 %v404
        %v507 = vpack.c.b16 %v506, %v506
        %508 = vrot.lane.b32.xlu0 %v507, 64
        %v509 = vpop.permute.xlu0 %508
        %v511 = vsel %vm411, %v503, 0
        %vm513 = vcmask 1043456
        %v515 = vsel %vm513, %v509, 0
        %517 = vmatpush.bf16.msra.mxu0 0
        %518 = vmatpush.bf16.msra.mxu0 0
        %519 = vmatpush.bf16.msra.mxu0 0
        %520 = vmatpush.bf16.msra.mxu0 0
        %521 = vmatpush.bf16.msra.mxu0 0
        %522 = vmatpush.bf16.msra.mxu0 0
        %523 = vmatpush.bf16.msra.mxu0 0
        %524 = vmatpush.bf16.msra.mxu0 %v515
        %525 = vmatmul.bf16.gmra.mxu0 %v511
        %v526 = vpop.f32.mrf.mxu0
        %v527 = vadd.f32 0.0, %v526
        %v528 = vpop.f32.mrf.mxu0
        %529 = vdwg.mxu0
        %v531 = vunpack.c.l.b16 %v405
        %v532 = vpack.c.b16 %v531, %v531
        %533 = vrot.lane.b32.xlu0 %v532, 64
        %v534 = vpop.permute.xlu0 %533
        %v536 = vsel %vm411, %v504, 0
        %v539 = vsel %vm513, %v534, 0
        %541 = vmatpush.bf16.msra.mxu0 0
        %542 = vmatpush.bf16.msra.mxu0 0
        %543 = vmatpush.bf16.msra.mxu0 0
        %544 = vmatpush.bf16.msra.mxu0 0
        %545 = vmatpush.bf16.msra.mxu0 0
        %546 = vmatpush.bf16.msra.mxu0 0
        %547 = vmatpush.bf16.msra.mxu0 0
        %548 = vmatpush.bf16.msra.mxu0 %v539
        %549 = vmatmul.bf16.gmra.mxu0 %v536
        %v550 = vpop.f32.mrf.mxu0
        %v551 = vadd.f32 0.0, %v550
        %v552 = vpop.f32.mrf.mxu0
        %553 = vdwg.mxu0
        %v555 = vunpack.c.l.b16 %v400
        %v556 = vpack.c.b16 %v555, %v555
        %557 = vrot.lane.b32.xlu0 %v556, 120
        %v558 = vpop.permute.xlu0 %557
        %559 = vrot.lane.b32.xlu0 %v408, 88
        %v560 = vpop.permute.xlu0 %559
        %v562 = vsel %vm411, %v558, 0
        %v565 = vsel %vm411, %v560, 0
        %567 = vmatpush.bf16.xpose.msra.mxu0 0
        %568 = vmatpush.bf16.xpose.msra.mxu0 0
        %569 = vmatpush.bf16.xpose.msra.mxu0 0
        %570 = vmatpush.bf16.xpose.msra.mxu0 0
        %571 = vmatpush.bf16.xpose.msra.mxu0 0
        %572 = vmatpush.bf16.xpose.msra.mxu0 0
        %573 = vmatpush.bf16.xpose.msra.mxu0 0
        %574 = vmatpush.bf16.xpose.msra.mxu0 %v565
        %575 = vmatmul.bf16.gmra.mxu0 %v562
        %v576 = vpop.f32.mrf.mxu0
        %v577 = vadd.f32 0.0, %v576
        %v578 = vpop.f32.mrf.mxu0
        %579 = vdwg.mxu0
        %v581 = vunpack.c.l.b16 %v401
        %v582 = vpack.c.b16 %v581, %v581
        %583 = vrot.lane.b32.xlu0 %v582, 120
        %v584 = vpop.permute.xlu0 %583
        %585 = vrot.lane.b32.xlu0 %v433, 88
        %v586 = vpop.permute.xlu0 %585
        %v588 = vsel %vm411, %v584, 0
        %v591 = vsel %vm411, %v586, 0
        %593 = vmatpush.bf16.xpose.msra.mxu0 0
        %594 = vmatpush.bf16.xpose.msra.mxu0 0
        %595 = vmatpush.bf16.xpose.msra.mxu0 0
        %596 = vmatpush.bf16.xpose.msra.mxu0 0
        %597 = vmatpush.bf16.xpose.msra.mxu0 0
        %598 = vmatpush.bf16.xpose.msra.mxu0 0
        %599 = vmatpush.bf16.xpose.msra.mxu0 0
        %600 = vmatpush.bf16.xpose.msra.mxu0 %v591
        %601 = vmatmul.bf16.gmra.mxu0 %v588
        %v602 = vpop.f32.mrf.mxu0
        %v603 = vadd.f32 0.0, %v602
        %v604 = vpop.f32.mrf.mxu0
        %605 = vdwg.mxu0
        %v606 = vsel %vm411, %v577, -inf
        %607 = vmax.xlane.f32.xlu0 %v606
        %v608 = vpop.xlane.xlu0 %607
        %v609 = vsel %vm411, %v603, -inf
        %610 = vmax.xlane.f32.xlu0 %v609
        %v611 = vpop.xlane.xlu0 %610
        %v612 = vsub.f32 %v577, %v608
        %v613 = vsub.f32 %v603, %v611
        %v614 = vmul.f32 %v612, 1.442695
        %v615 = vpow.pop %v614
        %v616 = vmul.f32 %v613, 1.442695
        %v617 = vpow.pop %v616
        %v618 = vsel %vm411, %v615, 0.0
        %619 = vadd.xlane.f32.xlu0 %v618
        %v620 = vpop.xlane.xlu0 %619
        %v621 = vsel %vm411, %v617, 0.0
        %622 = vadd.xlane.f32.xlu0 %v621
        %v623 = vpop.xlane.xlu0 %622
        %v624 = vrcp.pop %v620
        %v625 = vmul.f32 %v620, %v624
        %v626 = vsub.f32 1.0, %v625
        %v627 = vmul.f32 %v624, %v626
        %v628 = vadd.f32 %v624, %v627
        %vm629 = vweird.f32 %v620
        %vm630 = vweird.f32 %v624
        %vm631 = vmor %vm629, %vm630
        %v632 = vsel %vm631, %v624, %v628
        %v633 = vand.u32 2147483647, %v620
        %vm634 = vcmp.eq.f32.partialorder %v633, 8.507059e+37
        %v635 = vand.u32 %v620, 2147483648
        %v636 = vor.u32 1.1754944e-38, %v635
        %v637 = vsel %vm634, %v636, %v632
        %v638 = vrcp.pop %v623
        %v639 = vmul.f32 %v623, %v638
        %v640 = vsub.f32 1.0, %v639
        %v641 = vmul.f32 %v638, %v640
        %v642 = vadd.f32 %v638, %v641
        %vm643 = vweird.f32 %v623
        %vm644 = vweird.f32 %v638
        %vm645 = vmor %vm643, %vm644
        %v646 = vsel %vm645, %v638, %v642
        %v647 = vand.u32 2147483647, %v623
        %vm648 = vcmp.eq.f32.partialorder %v647, 8.507059e+37
        %v649 = vand.u32 %v623, 2147483648
        %v650 = vor.u32 1.1754944e-38, %v649
        %v651 = vsel %vm648, %v650, %v646
        %v652 = vmul.f32 %v615, %v637
        %v653 = vmul.f32 %v617, %v651
        %v654 = vpack.c.bf16 %v652, %v652
        %v655 = vpack.c.bf16 %v653, %v653
        %656 = vrot.lane.b32.xlu0 %v507, 56
        %v657 = vpop.permute.xlu0 %656
        %v659 = vsel %vm411, %v654, 0
        %v662 = vsel %vm513, %v657, 0
        %664 = vmatpush.bf16.msra.mxu0 0
        %665 = vmatpush.bf16.msra.mxu0 0
        %666 = vmatpush.bf16.msra.mxu0 0
        %667 = vmatpush.bf16.msra.mxu0 0
        %668 = vmatpush.bf16.msra.mxu0 0
        %669 = vmatpush.bf16.msra.mxu0 0
        %670 = vmatpush.bf16.msra.mxu0 0
        %671 = vmatpush.bf16.msra.mxu0 %v662
        %672 = vmatmul.bf16.gmra.mxu0 %v659
        %v673 = vpop.f32.mrf.mxu0
        %v674 = vadd.f32 0.0, %v673
        %v675 = vpop.f32.mrf.mxu0
        %676 = vdwg.mxu0
        %677 = vrot.lane.b32.xlu0 %v532, 56
        %v678 = vpop.permute.xlu0 %677
        %v680 = vsel %vm411, %v655, 0
        %v683 = vsel %vm513, %v678, 0
        %685 = vmatpush.bf16.msra.mxu0 0
        %686 = vmatpush.bf16.msra.mxu0 0
        %687 = vmatpush.bf16.msra.mxu0 0
        %688 = vmatpush.bf16.msra.mxu0 0
        %689 = vmatpush.bf16.msra.mxu0 0
        %690 = vmatpush.bf16.msra.mxu0 0
        %691 = vmatpush.bf16.msra.mxu0 0
        %692 = vmatpush.bf16.msra.mxu0 %v683
        %693 = vmatmul.bf16.gmra.mxu0 %v680
        %v694 = vpop.f32.mrf.mxu0
        %v695 = vadd.f32 0.0, %v694
        %v696 = vpop.f32.mrf.mxu0
        %697 = vdwg.mxu0
        %698 = vrot.lane.b32.xlu0 %v556, 112
        %v699 = vpop.permute.xlu0 %698
        %700 = vrot.lane.b32.xlu0 %v408, 80
        %v701 = vpop.permute.xlu0 %700
        %v703 = vsel %vm411, %v699, 0
        %v706 = vsel %vm411, %v701, 0
        %708 = vmatpush.bf16.xpose.msra.mxu0 0
        %709 = vmatpush.bf16.xpose.msra.mxu0 0
        %710 = vmatpush.bf16.xpose.msra.mxu0 0
        %711 = vmatpush.bf16.xpose.msra.mxu0 0
        %712 = vmatpush.bf16.xpose.msra.mxu0 0
        %713 = vmatpush.bf16.xpose.msra.mxu0 0
        %714 = vmatpush.bf16.xpose.msra.mxu0 0
        %715 = vmatpush.bf16.xpose.msra.mxu0 %v706
        %716 = vmatmul.bf16.gmra.mxu0 %v703
        %v717 = vpop.f32.mrf.mxu0
        %v718 = vadd.f32 0.0, %v717
        %v719 = vpop.f32.mrf.mxu0
        %720 = vdwg.mxu0
        %721 = vrot.lane.b32.xlu0 %v582, 112
        %v722 = vpop.permute.xlu0 %721
        %723 = vrot.lane.b32.xlu0 %v433, 80
        %v724 = vpop.permute.xlu0 %723
        %v726 = vsel %vm411, %v722, 0
        %v729 = vsel %vm411, %v724, 0
        %731 = vmatpush.bf16.xpose.msra.mxu0 0
        %732 = vmatpush.bf16.xpose.msra.mxu0 0
        %733 = vmatpush.bf16.xpose.msra.mxu0 0
        %734 = vmatpush.bf16.xpose.msra.mxu0 0
        %735 = vmatpush.bf16.xpose.msra.mxu0 0
        %736 = vmatpush.bf16.xpose.msra.mxu0 0
        %737 = vmatpush.bf16.xpose.msra.mxu0 0
        %738 = vmatpush.bf16.xpose.msra.mxu0 %v729
        %739 = vmatmul.bf16.gmra.mxu0 %v726
        %v740 = vpop.f32.mrf.mxu0
        %v741 = vadd.f32 0.0, %v740
        %v742 = vpop.f32.mrf.mxu0
        %743 = vdwg.mxu0
        %v744 = vsel %vm411, %v718, -inf
        %745 = vmax.xlane.f32.xlu0 %v744
        %v746 = vpop.xlane.xlu0 %745
        %v747 = vsel %vm411, %v741, -inf
        %748 = vmax.xlane.f32.xlu0 %v747
        %v749 = vpop.xlane.xlu0 %748
        %v750 = vsub.f32 %v718, %v746
        %v751 = vsub.f32 %v741, %v749
        %v752 = vmul.f32 %v750, 1.442695
        %v753 = vpow.pop %v752
        %v754 = vmul.f32 %v751, 1.442695
        %v755 = vpow.pop %v754
        %v756 = vsel %vm411, %v753, 0.0
        %757 = vadd.xlane.f32.xlu0 %v756
        %v758 = vpop.xlane.xlu0 %757
        %v759 = vsel %vm411, %v755, 0.0
        %760 = vadd.xlane.f32.xlu0 %v759
        %v761 = vpop.xlane.xlu0 %760
        %v762 = vrcp.pop %v758
        %v763 = vmul.f32 %v758, %v762
        %v764 = vsub.f32 1.0, %v763
        %v765 = vmul.f32 %v762, %v764
        %v766 = vadd.f32 %v762, %v765
        %vm767 = vweird.f32 %v758
        %vm768 = vweird.f32 %v762
        %vm769 = vmor %vm767, %vm768
        %v770 = vsel %vm769, %v762, %v766
        %v771 = vand.u32 2147483647, %v758
        %vm772 = vcmp.eq.f32.partialorder %v771, 8.507059e+37
        %v773 = vand.u32 %v758, 2147483648
        %v774 = vor.u32 1.1754944e-38, %v773
        %v775 = vsel %vm772, %v774, %v770
        %v776 = vrcp.pop %v761
        %v777 = vmul.f32 %v761, %v776
        %v778 = vsub.f32 1.0, %v777
        %v779 = vmul.f32 %v776, %v778
        %v780 = vadd.f32 %v776, %v779
        %vm781 = vweird.f32 %v761
        %vm782 = vweird.f32 %v776
        %vm783 = vmor %vm781, %vm782
        %v784 = vsel %vm783, %v776, %v780
        %v785 = vand.u32 2147483647, %v761
        %vm786 = vcmp.eq.f32.partialorder %v785, 8.507059e+37
        %v787 = vand.u32 %v761, 2147483648
        %v788 = vor.u32 1.1754944e-38, %v787
        %v789 = vsel %vm786, %v788, %v784
        %v790 = vmul.f32 %v753, %v775
        %v791 = vmul.f32 %v755, %v789
        %v792 = vpack.c.bf16 %v790, %v790
        %v793 = vpack.c.bf16 %v791, %v791
        %794 = vrot.lane.b32.xlu0 %v507, 48
        %v795 = vpop.permute.xlu0 %794
        %v797 = vsel %vm411, %v792, 0
        %v800 = vsel %vm513, %v795, 0
        %802 = vmatpush.bf16.msra.mxu0 0
        %803 = vmatpush.bf16.msra.mxu0 0
        %804 = vmatpush.bf16.msra.mxu0 0
        %805 = vmatpush.bf16.msra.mxu0 0
        %806 = vmatpush.bf16.msra.mxu0 0
        %807 = vmatpush.bf16.msra.mxu0 0
        %808 = vmatpush.bf16.msra.mxu0 0
        %809 = vmatpush.bf16.msra.mxu0 %v800
        %810 = vmatmul.bf16.gmra.mxu0 %v797
        %v811 = vpop.f32.mrf.mxu0
        %v812 = vadd.f32 0.0, %v811
        %v813 = vpop.f32.mrf.mxu0
        %814 = vdwg.mxu0
        %815 = vrot.lane.b32.xlu0 %v532, 48
        %v816 = vpop.permute.xlu0 %815
        %v818 = vsel %vm411, %v793, 0
        %v821 = vsel %vm513, %v816, 0
        %823 = vmatpush.bf16.msra.mxu0 0
        %824 = vmatpush.bf16.msra.mxu0 0
        %825 = vmatpush.bf16.msra.mxu0 0
        %826 = vmatpush.bf16.msra.mxu0 0
        %827 = vmatpush.bf16.msra.mxu0 0
        %828 = vmatpush.bf16.msra.mxu0 0
        %829 = vmatpush.bf16.msra.mxu0 0
        %830 = vmatpush.bf16.msra.mxu0 %v821
        %831 = vmatmul.bf16.gmra.mxu0 %v818
        %v832 = vpop.f32.mrf.mxu0
        %v833 = vadd.f32 0.0, %v832
        %v834 = vpop.f32.mrf.mxu0
        %835 = vdwg.mxu0
        %836 = vrot.lane.b32.xlu0 %v556, 104
        %v837 = vpop.permute.xlu0 %836
        %838 = vrot.lane.b32.xlu0 %v408, 72
        %v839 = vpop.permute.xlu0 %838
        %v841 = vsel %vm411, %v837, 0
        %v844 = vsel %vm411, %v839, 0
        %846 = vmatpush.bf16.xpose.msra.mxu0 0
        %847 = vmatpush.bf16.xpose.msra.mxu0 0
        %848 = vmatpush.bf16.xpose.msra.mxu0 0
        %849 = vmatpush.bf16.xpose.msra.mxu0 0
        %850 = vmatpush.bf16.xpose.msra.mxu0 0
        %851 = vmatpush.bf16.xpose.msra.mxu0 0
        %852 = vmatpush.bf16.xpose.msra.mxu0 0
        %853 = vmatpush.bf16.xpose.msra.mxu0 %v844
        %854 = vmatmul.bf16.gmra.mxu0 %v841
        %v855 = vpop.f32.mrf.mxu0
        %v856 = vadd.f32 0.0, %v855
        %v857 = vpop.f32.mrf.mxu0
        %858 = vdwg.mxu0
        %859 = vrot.lane.b32.xlu0 %v582, 104
        %v860 = vpop.permute.xlu0 %859
        %861 = vrot.lane.b32.xlu0 %v433, 72
        %v862 = vpop.permute.xlu0 %861
        %v864 = vsel %vm411, %v860, 0
        %v867 = vsel %vm411, %v862, 0
        %869 = vmatpush.bf16.xpose.msra.mxu0 0
        %870 = vmatpush.bf16.xpose.msra.mxu0 0
        %871 = vmatpush.bf16.xpose.msra.mxu0 0
        %872 = vmatpush.bf16.xpose.msra.mxu0 0
        %873 = vmatpush.bf16.xpose.msra.mxu0 0
        %874 = vmatpush.bf16.xpose.msra.mxu0 0
        %875 = vmatpush.bf16.xpose.msra.mxu0 0
        %876 = vmatpush.bf16.xpose.msra.mxu0 %v867
        %877 = vmatmul.bf16.gmra.mxu0 %v864
        %v878 = vpop.f32.mrf.mxu0
        %v879 = vadd.f32 0.0, %v878
        %v880 = vpop.f32.mrf.mxu0
        %881 = vdwg.mxu0
        %v882 = vsel %vm411, %v856, -inf
        %883 = vmax.xlane.f32.xlu0 %v882
        %v884 = vpop.xlane.xlu0 %883
        %v885 = vsel %vm411, %v879, -inf
        %886 = vmax.xlane.f32.xlu0 %v885
        %v887 = vpop.xlane.xlu0 %886
        %v888 = vsub.f32 %v856, %v884
        %v889 = vsub.f32 %v879, %v887
        %v890 = vmul.f32 %v888, 1.442695
        %v891 = vpow.pop %v890
        %v892 = vmul.f32 %v889, 1.442695
        %v893 = vpow.pop %v892
        %v894 = vsel %vm411, %v891, 0.0
        %895 = vadd.xlane.f32.xlu0 %v894
        %v896 = vpop.xlane.xlu0 %895
        %v897 = vsel %vm411, %v893, 0.0
        %898 = vadd.xlane.f32.xlu0 %v897
        %v899 = vpop.xlane.xlu0 %898
        %v900 = vrcp.pop %v896
        %v901 = vmul.f32 %v896, %v900
        %v902 = vsub.f32 1.0, %v901
        %v903 = vmul.f32 %v900, %v902
        %v904 = vadd.f32 %v900, %v903
        %vm905 = vweird.f32 %v896
        %vm906 = vweird.f32 %v900
        %vm907 = vmor %vm905, %vm906
        %v908 = vsel %vm907, %v900, %v904
        %v909 = vand.u32 2147483647, %v896
        %vm910 = vcmp.eq.f32.partialorder %v909, 8.507059e+37
        %v911 = vand.u32 %v896, 2147483648
        %v912 = vor.u32 1.1754944e-38, %v911
        %v913 = vsel %vm910, %v912, %v908
        %v914 = vrcp.pop %v899
        %v915 = vmul.f32 %v899, %v914
        %v916 = vsub.f32 1.0, %v915
        %v917 = vmul.f32 %v914, %v916
        %v918 = vadd.f32 %v914, %v917
        %vm919 = vweird.f32 %v899
        %vm920 = vweird.f32 %v914
        %vm921 = vmor %vm919, %vm920
        %v922 = vsel %vm921, %v914, %v918
        %v923 = vand.u32 2147483647, %v899
        %vm924 = vcmp.eq.f32.partialorder %v923, 8.507059e+37
        %v925 = vand.u32 %v899, 2147483648
        %v926 = vor.u32 1.1754944e-38, %v925
        %v927 = vsel %vm924, %v926, %v922
        %v928 = vmul.f32 %v891, %v913
        %v929 = vmul.f32 %v893, %v927
        %v930 = vpack.c.bf16 %v928, %v928
        %v931 = vpack.c.bf16 %v929, %v929
        %932 = vrot.lane.b32.xlu0 %v507, 40
        %v933 = vpop.permute.xlu0 %932
        %v935 = vsel %vm411, %v930, 0
        %v938 = vsel %vm513, %v933, 0
        %940 = vmatpush.bf16.msra.mxu0 0
        %941 = vmatpush.bf16.msra.mxu0 0
        %942 = vmatpush.bf16.msra.mxu0 0
        %943 = vmatpush.bf16.msra.mxu0 0
        %944 = vmatpush.bf16.msra.mxu0 0
        %945 = vmatpush.bf16.msra.mxu0 0
        %946 = vmatpush.bf16.msra.mxu0 0
        %947 = vmatpush.bf16.msra.mxu0 %v938
        %948 = vmatmul.bf16.gmra.mxu0 %v935
        %v949 = vpop.f32.mrf.mxu0
        %v950 = vadd.f32 0.0, %v949
        %v951 = vpop.f32.mrf.mxu0
        %952 = vdwg.mxu0
        %953 = vrot.lane.b32.xlu0 %v532, 40
        %v954 = vpop.permute.xlu0 %953
        %v956 = vsel %vm411, %v931, 0
        %v959 = vsel %vm513, %v954, 0
        %961 = vmatpush.bf16.msra.mxu0 0
        %962 = vmatpush.bf16.msra.mxu0 0
        %963 = vmatpush.bf16.msra.mxu0 0
        %964 = vmatpush.bf16.msra.mxu0 0
        %965 = vmatpush.bf16.msra.mxu0 0
        %966 = vmatpush.bf16.msra.mxu0 0
        %967 = vmatpush.bf16.msra.mxu0 0
        %968 = vmatpush.bf16.msra.mxu0 %v959
        %969 = vmatmul.bf16.gmra.mxu0 %v956
        %v970 = vpop.f32.mrf.mxu0
        %v971 = vadd.f32 0.0, %v970
        %v972 = vpop.f32.mrf.mxu0
        %973 = vdwg.mxu0
        %976 = vrot.lane.b32.xlu0 %v674, 8
        %v977 = vpop.permute.xlu0 %976
        %978 = vrot.lane.b32.xlu0 %v695, 8
        %v979 = vpop.permute.xlu0 %978
        %984 = vrot.lane.b32.xlu0 %v812, 16
        %v985 = vpop.permute.xlu0 %984
        %986 = vrot.lane.b32.xlu0 %v833, 16
        %v987 = vpop.permute.xlu0 %986
        %992 = vrot.lane.b32.xlu0 %v950, 24
        %v993 = vpop.permute.xlu0 %992
        %994 = vrot.lane.b32.xlu0 %v971, 24
        %v995 = vpop.permute.xlu0 %994
        %v998 = vsel %vm411, %v527, %v977
        %v999 = vsel %vm411, %v551, %v979
        %vm1000 = vcmask 130048
        %v1001 = vsel %vm1000, %v998, %v985
        %v1002 = vsel %vm1000, %v999, %v987
        %vm1003 = vcmask 195584
        %v1004 = vsel %vm1003, %v1001, %v993
        %v1005 = vsel %vm1003, %v1002, %v995
        %v1006 = vpack.c.bf16 %v1005, %v1004
        %v1011 = vunpack.c.l.b16 %v277
        %v1012 = vunpack.c.l.b16 %v278
        %v1013 = vunpack.c.l.b16 %v279
        %v1014 = vunpack.c.l.b16 %v280
        %v1015 = vpack.c.b16 %v1012, %v1011
        %v1016 = vpack.c.b16 %v1014, %v1013
        %v1020 = vsel %vm295, %v1006, 0
        %1022 = vmatpush.bf16.msra.mxu0 0
        %1023 = vmatpush.bf16.msra.mxu0 0
        %1024 = vmatpush.bf16.msra.mxu0 0
        %1025 = vmatpush.bf16.msra.mxu0 0
        %1026 = vmatpush.bf16.msra.mxu0 0
        %1027 = vmatpush.bf16.msra.mxu0 0
        %1028 = vmatpush.bf16.msra.mxu0 %v1016
        %1029 = vmatpush.bf16.msra.mxu0 %v1015
        %1030 = vmatmul.bf16.gmra.mxu0 %v1020
        %v1031 = vpop.f32.mrf.mxu0
        %v1032 = vadd.f32 0.0, %v1031
        %v1033 = vpop.f32.mrf.mxu0
        %v1034 = vadd.f32 0.0, %v1033
        %1035 = vdwg.mxu0
        %v1036 = vadd.f32 %v271, %v1032
        %v1037 = vadd.f32 %v272, %v1034
        %v1038 = vperm.slane %v293, 3
        %v1039 = vadd.f32 %v1036, %v1038
        %v1040 = vadd.f32 %v1037, %v1038
        %v1041 = vsel %vm295, %v1039, 0.0
        %1042 = vadd.xlane.f32.xlu0 %v1041
        %v1043 = vpop.xlane.xlu0 %1042
        %v1044 = vsel %vm295, %v1040, 0.0
        %1045 = vadd.xlane.f32.xlu0 %v1044
        %v1046 = vpop.xlane.xlu0 %1045
        %v1047 = vmul.f32 %v1043, %v308
        %v1048 = vmul.f32 %v1046, %v308
        %v1049 = vsub.f32 %v1039, %v1047
        %v1050 = vsub.f32 %v1040, %v1048
        %v1051 = vmul.f32 %v1049, %v1049
        %v1052 = vmul.f32 %v1050, %v1050
        %v1053 = vsel %vm295, %v1051, 0.0
        %1054 = vadd.xlane.f32.xlu0 %v1053
        %v1055 = vpop.xlane.xlu0 %1054
        %v1056 = vsel %vm295, %v1052, 0.0
        %1057 = vadd.xlane.f32.xlu0 %v1056
        %v1058 = vpop.xlane.xlu0 %1057
        %v1059 = vmul.f32 %v1055, %v308
        %v1060 = vmul.f32 %v1058, %v308
        %v1061 = vadd.f32 %v1059, 1e-05
        %v1062 = vadd.f32 %v1060, 1e-05
        %v1063 = vrsqrt.pop %v1061
        %v1064 = vmul.f32 %v1063, %v1061
        %v1065 = vmul.f32 %v1064, %v1063
        %v1066 = vmul.f32 0.5, %v1065
        %v1067 = vsub.f32 1.5, %v1066
        %v1068 = vmul.f32 %v1063, %v1067
        %vm1069 = vweird.f32 %v1061
        %vm1070 = vweird.f32 %v1063
        %vm1071 = vmor %vm1069, %vm1070
        %v1072 = vsel %vm1071, %v1063, %v1068
        %v1073 = vrsqrt.pop %v1062
        %v1074 = vmul.f32 %v1073, %v1062
        %v1075 = vmul.f32 %v1074, %v1073
        %v1076 = vmul.f32 0.5, %v1075
        %v1077 = vsub.f32 1.5, %v1076
        %v1078 = vmul.f32 %v1073, %v1077
        %vm1079 = vweird.f32 %v1062
        %vm1080 = vweird.f32 %v1073
        %vm1081 = vmor %vm1079, %vm1080
        %v1082 = vsel %vm1081, %v1073, %v1078
        %v1083 = vmul.f32 %v1049, %v1072
        %v1084 = vmul.f32 %v1050, %v1082
        %v1085 = vperm.slane %v293, 6
        %v1086 = vmul.f32 %v1083, %v1085
        %v1087 = vmul.f32 %v1084, %v1085
        %v1088 = vperm.slane %v293, 7
        %v1089 = vadd.f32 %v1086, %v1088
        %v1090 = vadd.f32 %v1087, %v1088
        %v1091 = vpack.c.bf16 %v1090, %v1089
        %v1092 = vperm.slane %v294, 1
        %v1097 = vunpack.c.l.b16 %v281
        %v1098 = vunpack.c.l.b16 %v282
        %v1099 = vunpack.c.l.b16 %v283
        %v1100 = vunpack.c.l.b16 %v284
        %v1101 = vpack.c.b16 %v1098, %v1097
        %v1102 = vpack.c.b16 %v1100, %v1099
        %v1106 = vsel %vm295, %v1091, 0
        %1108 = vmatpush.bf16.msra.mxu0 0
        %1109 = vmatpush.bf16.msra.mxu0 0
        %1110 = vmatpush.bf16.msra.mxu0 0
        %1111 = vmatpush.bf16.msra.mxu0 0
        %1112 = vmatpush.bf16.msra.mxu0 0
        %1113 = vmatpush.bf16.msra.mxu0 0
        %1114 = vmatpush.bf16.msra.mxu0 %v1102
        %1115 = vmatpush.bf16.msra.mxu0 %v1101
        %1116 = vmatmul.bf16.gmra.mxu0 %v1106
        %v1117 = vpop.f32.mrf.mxu0
        %v1118 = vadd.f32 %v1092, %v1117
        %v1119 = vpop.f32.mrf.mxu0
        %v1120 = vadd.f32 %v1092, %v1119
        %1121 = vdwg.mxu0
        %v1122 = vmax.f32 %v1118, 0.0
        %v1123 = vmax.f32 %v1120, 0.0
        %v1124 = vpack.c.bf16 %v1123, %v1122
        %v1125 = vperm.slane %v294, 0
        %v1134 = vunpack.c.l.b16 %v285
        %v1135 = vunpack.c.l.b16 %v286
        %v1136 = vunpack.c.l.b16 %v287
        %v1137 = vunpack.c.l.b16 %v288
        %v1138 = vunpack.c.l.b16 %v289
        %v1139 = vunpack.c.l.b16 %v290
        %v1140 = vunpack.c.l.b16 %v291
        %v1141 = vunpack.c.l.b16 %v292
        %v1142 = vpack.c.b16 %v1135, %v1134
        %v1143 = vpack.c.b16 %v1137, %v1136
        %v1144 = vpack.c.b16 %v1139, %v1138
        %v1145 = vpack.c.b16 %v1141, %v1140
        %vm1150 = vcmask 523264
        %v1152 = vsel %vm1150, %v1124, 0
        %1154 = vmatpush.bf16.msra.mxu0 0
        %1155 = vmatpush.bf16.msra.mxu0 0
        %1156 = vmatpush.bf16.msra.mxu0 0
        %1157 = vmatpush.bf16.msra.mxu0 0
        %1158 = vmatpush.bf16.msra.mxu0 %v1145
        %1159 = vmatpush.bf16.msra.mxu0 %v1144
        %1160 = vmatpush.bf16.msra.mxu0 %v1143
        %1161 = vmatpush.bf16.msra.mxu0 %v1142
        %1162 = vmatmul.bf16.gmra.mxu0 %v1152
        %v1163 = vpop.f32.mrf.mxu0
        %v1164 = vadd.f32 %v1125, %v1163
        %v1165 = vpop.f32.mrf.mxu0
        %v1166 = vadd.f32 %v1125, %v1165
        %1167 = vdwg.mxu0
        %v1168 = vadd.f32 %v1039, %v1164
        %v1169 = vadd.f32 %v1040, %v1166
        %s1170 = scalar_lea.vmem %s1, 16
        %v1171 = vld [vmem:[%s1170] sm:$0xf]
        %v1172 = vld [vmem:[%s1170 + $0x4] sm:$0xf]
        %v1173 = vld [vmem:[%s1170 + $0x8] sm:$0xf]
        %v1174 = vld [vmem:[%s1170 + $0xc] sm:$0xf]
        %s1175 = scalar_lea.vmem %s2, 16
        %v1176 = vld [vmem:[%s1175] sm:$0xf]
        %v1177 = vld [vmem:[%s1175 + $0x4] sm:$0xf]
        %v1178 = vld [vmem:[%s1175 + $0x8] sm:$0xf]
        %v1179 = vld [vmem:[%s1175 + $0xc] sm:$0xf]
        %s1180 = scalar_lea.vmem [#allocation2], 16
        %v1181 = vld [vmem:[%s1180] sm:$0xf]
        %v1182 = vld [vmem:[%s1180 + $0x4] sm:$0xf]
        %v1183 = vld [vmem:[%s1180 + $0x8] sm:$0xf]
        %v1184 = vld [vmem:[%s1180 + $0xc] sm:$0xf]
        %s1185 = scalar_lea.vmem %s4, 32
        %v1186 = vld [vmem:[%s1185] sm:$0xf]
        %v1187 = vld [vmem:[%s1185 + $0x4] sm:$0xf]
        %v1188 = vld [vmem:[%s1185 + $0x8] sm:$0xf]
        %v1189 = vld [vmem:[%s1185 + $0xc] sm:$0xf]
        %v1190 = vld [vmem:[%s1185 + $0x10] sm:$0xf]
        %v1191 = vld [vmem:[%s1185 + $0x14] sm:$0xf]
        %v1192 = vld [vmem:[%s1185 + $0x18] sm:$0xf]
        %v1193 = vld [vmem:[%s1185 + $0x1c] sm:$0xf]
        %s1194 = scalar_lea.vmem %s5, 16
        %v1195 = vld [vmem:[%s1194] sm:$0xff]
        %v1196 = vld [vmem:[%s1194 + $0x8] sm:$0x3]
        %v1197 = vsel %vm295, %v1168, 0.0
        %1198 = vadd.xlane.f32.xlu0 %v1197
        %v1199 = vpop.xlane.xlu0 %1198
        %v1200 = vsel %vm295, %v1169, 0.0
        %1201 = vadd.xlane.f32.xlu0 %v1200
        %v1202 = vpop.xlane.xlu0 %1201
        %v1203 = vmul.f32 %v1199, %v308
        %v1204 = vmul.f32 %v1202, %v308
        %v1205 = vsub.f32 %v1168, %v1203
        %v1206 = vsub.f32 %v1169, %v1204
        %v1207 = vmul.f32 %v1205, %v1205
        %v1208 = vmul.f32 %v1206, %v1206
        %v1209 = vsel %vm295, %v1207, 0.0
        %1210 = vadd.xlane.f32.xlu0 %v1209
        %v1211 = vpop.xlane.xlu0 %1210
        %v1212 = vsel %vm295, %v1208, 0.0
        %1213 = vadd.xlane.f32.xlu0 %v1212
        %v1214 = vpop.xlane.xlu0 %1213
        %v1215 = vmul.f32 %v1211, %v308
        %v1216 = vmul.f32 %v1214, %v308
        %v1217 = vadd.f32 %v1215, 1e-05
        %v1218 = vadd.f32 %v1216, 1e-05
        %v1219 = vrsqrt.pop %v1217
        %v1220 = vmul.f32 %v1219, %v1217
        %v1221 = vmul.f32 %v1220, %v1219
        %v1222 = vmul.f32 0.5, %v1221
        %v1223 = vsub.f32 1.5, %v1222
        %v1224 = vmul.f32 %v1219, %v1223
        %vm1225 = vweird.f32 %v1217
        %vm1226 = vweird.f32 %v1219
        %vm1227 = vmor %vm1225, %vm1226
        %v1228 = vsel %vm1227, %v1219, %v1224
        %v1229 = vrsqrt.pop %v1218
        %v1230 = vmul.f32 %v1229, %v1218
        %v1231 = vmul.f32 %v1230, %v1229
        %v1232 = vmul.f32 0.5, %v1231
        %v1233 = vsub.f32 1.5, %v1232
        %v1234 = vmul.f32 %v1229, %v1233
        %vm1235 = vweird.f32 %v1218
        %vm1236 = vweird.f32 %v1229
        %vm1237 = vmor %vm1235, %vm1236
        %v1238 = vsel %vm1237, %v1229, %v1234
        %v1239 = vmul.f32 %v1205, %v1228
        %v1240 = vmul.f32 %v1206, %v1238
        %v1241 = vperm.slane %v1195, 4
        %v1242 = vmul.f32 %v1239, %v1241
        %v1243 = vmul.f32 %v1240, %v1241
        %v1244 = vperm.slane %v1195, 5
        %v1245 = vadd.f32 %v1242, %v1244
        %v1246 = vadd.f32 %v1243, %v1244
        %v1247 = vpack.c.bf16 %v1246, %v1245
        %v1252 = vunpack.c.l.b16 %v1171
        %v1253 = vunpack.c.l.b16 %v1172
        %v1254 = vunpack.c.l.b16 %v1173
        %v1255 = vunpack.c.l.b16 %v1174
        %v1256 = vpack.c.b16 %v1253, %v1252
        %v1257 = vpack.c.b16 %v1255, %v1254
        %v1261 = vsel %vm295, %v1247, 0
        %1263 = vmatpush.bf16.msra.mxu0 0
        %1264 = vmatpush.bf16.msra.mxu0 0
        %1265 = vmatpush.bf16.msra.mxu0 0
        %1266 = vmatpush.bf16.msra.mxu0 0
        %1267 = vmatpush.bf16.msra.mxu0 0
        %1268 = vmatpush.bf16.msra.mxu0 0
        %1269 = vmatpush.bf16.msra.mxu0 %v1257
        %1270 = vmatpush.bf16.msra.mxu0 %v1256
        %1271 = vmatmul.bf16.gmra.mxu0 %v1261
        %v1272 = vpop.f32.mrf.mxu0
        %v1273 = vadd.f32 0.0, %v1272
        %v1274 = vpop.f32.mrf.mxu0
        %v1275 = vadd.f32 0.0, %v1274
        %1276 = vdwg.mxu0
        %v1277 = vperm.slane %v1195, 0
        %v1278 = vadd.f32 %v1273, %v1277
        %v1279 = vadd.f32 %v1275, %v1277
        %v1280 = vperm.slane %v1195, 1
        %1282 = vrot.lane.b32.xlu0 %v1280, 32
        %v1283 = vpop.permute.xlu0 %1282
        %v1285 = vadd.f32 %v1273, %v1283
        %v1286 = vadd.f32 %v1275, %v1283
        %v1287 = vperm.slane %v1195, 2
        %1289 = vrot.lane.b32.xlu0 %v1287, 64
        %v1290 = vpop.permute.xlu0 %1289
        %v1292 = vadd.f32 %v1273, %v1290
        %v1293 = vadd.f32 %v1275, %v1290
        %v1294 = vpack.c.bf16 %v1278, %v1278
        %v1295 = vpack.c.bf16 %v1279, %v1279
        %v1296 = vpack.c.bf16 %v1285, %v1285
        %v1297 = vpack.c.bf16 %v1286, %v1286
        %v1298 = vpack.c.bf16 %v1292, %v1292
        %v1299 = vpack.c.bf16 %v1293, %v1293
        %v1301 = vunpack.c.l.b16 %v1296
        %v1302 = vpack.c.b16 %v1301, %v1301
        %1303 = vrot.lane.b32.xlu0 %v1302, 96
        %v1304 = vpop.permute.xlu0 %1303
        %v1306 = vsel %vm411, %v1294, 0
        %v1309 = vsel %vm411, %v1304, 0
        %1311 = vmatpush.bf16.xpose.msra.mxu0 0
        %1312 = vmatpush.bf16.xpose.msra.mxu0 0
        %1313 = vmatpush.bf16.xpose.msra.mxu0 0
        %1314 = vmatpush.bf16.xpose.msra.mxu0 0
        %1315 = vmatpush.bf16.xpose.msra.mxu0 0
        %1316 = vmatpush.bf16.xpose.msra.mxu0 0
        %1317 = vmatpush.bf16.xpose.msra.mxu0 0
        %1318 = vmatpush.bf16.xpose.msra.mxu0 %v1309
        %1319 = vmatmul.bf16.gmra.mxu0 %v1306
        %v1320 = vpop.f32.mrf.mxu0
        %v1321 = vadd.f32 0.0, %v1320
        %v1322 = vpop.f32.mrf.mxu0
        %1323 = vdwg.mxu0
        %v1325 = vunpack.c.l.b16 %v1297
        %v1326 = vpack.c.b16 %v1325, %v1325
        %1327 = vrot.lane.b32.xlu0 %v1326, 96
        %v1328 = vpop.permute.xlu0 %1327
        %v1330 = vsel %vm411, %v1295, 0
        %v1333 = vsel %vm411, %v1328, 0
        %1335 = vmatpush.bf16.xpose.msra.mxu0 0
        %1336 = vmatpush.bf16.xpose.msra.mxu0 0
        %1337 = vmatpush.bf16.xpose.msra.mxu0 0
        %1338 = vmatpush.bf16.xpose.msra.mxu0 0
        %1339 = vmatpush.bf16.xpose.msra.mxu0 0
        %1340 = vmatpush.bf16.xpose.msra.mxu0 0
        %1341 = vmatpush.bf16.xpose.msra.mxu0 0
        %1342 = vmatpush.bf16.xpose.msra.mxu0 %v1333
        %1343 = vmatmul.bf16.gmra.mxu0 %v1330
        %v1344 = vpop.f32.mrf.mxu0
        %v1345 = vadd.f32 0.0, %v1344
        %v1346 = vpop.f32.mrf.mxu0
        %1347 = vdwg.mxu0
        %v1348 = vsel %vm411, %v1321, -inf
        %1349 = vmax.xlane.f32.xlu0 %v1348
        %v1350 = vpop.xlane.xlu0 %1349
        %v1351 = vsel %vm411, %v1345, -inf
        %1352 = vmax.xlane.f32.xlu0 %v1351
        %v1353 = vpop.xlane.xlu0 %1352
        %v1354 = vsub.f32 %v1321, %v1350
        %v1355 = vsub.f32 %v1345, %v1353
        %v1356 = vmul.f32 %v1354, 1.442695
        %v1357 = vpow.pop %v1356
        %v1358 = vmul.f32 %v1355, 1.442695
        %v1359 = vpow.pop %v1358
        %v1360 = vsel %vm411, %v1357, 0.0
        %1361 = vadd.xlane.f32.xlu0 %v1360
        %v1362 = vpop.xlane.xlu0 %1361
        %v1363 = vsel %vm411, %v1359, 0.0
        %1364 = vadd.xlane.f32.xlu0 %v1363
        %v1365 = vpop.xlane.xlu0 %1364
        %v1366 = vrcp.pop %v1362
        %v1367 = vmul.f32 %v1362, %v1366
        %v1368 = vsub.f32 1.0, %v1367
        %v1369 = vmul.f32 %v1366, %v1368
        %v1370 = vadd.f32 %v1366, %v1369
        %vm1371 = vweird.f32 %v1362
        %vm1372 = vweird.f32 %v1366
        %vm1373 = vmor %vm1371, %vm1372
        %v1374 = vsel %vm1373, %v1366, %v1370
        %v1375 = vand.u32 2147483647, %v1362
        %vm1376 = vcmp.eq.f32.partialorder %v1375, 8.507059e+37
        %v1377 = vand.u32 %v1362, 2147483648
        %v1378 = vor.u32 1.1754944e-38, %v1377
        %v1379 = vsel %vm1376, %v1378, %v1374
        %v1380 = vrcp.pop %v1365
        %v1381 = vmul.f32 %v1365, %v1380
        %v1382 = vsub.f32 1.0, %v1381
        %v1383 = vmul.f32 %v1380, %v1382
        %v1384 = vadd.f32 %v1380, %v1383
        %vm1385 = vweird.f32 %v1365
        %vm1386 = vweird.f32 %v1380
        %vm1387 = vmor %vm1385, %vm1386
        %v1388 = vsel %vm1387, %v1380, %v1384
        %v1389 = vand.u32 2147483647, %v1365
        %vm1390 = vcmp.eq.f32.partialorder %v1389, 8.507059e+37
        %v1391 = vand.u32 %v1365, 2147483648
        %v1392 = vor.u32 1.1754944e-38, %v1391
        %v1393 = vsel %vm1390, %v1392, %v1388
        %v1394 = vmul.f32 %v1357, %v1379
        %v1395 = vmul.f32 %v1359, %v1393
        %v1396 = vpack.c.bf16 %v1394, %v1394
        %v1397 = vpack.c.bf16 %v1395, %v1395
        %v1399 = vunpack.c.l.b16 %v1298
        %v1400 = vpack.c.b16 %v1399, %v1399
        %1401 = vrot.lane.b32.xlu0 %v1400, 64
        %v1402 = vpop.permute.xlu0 %1401
        %v1404 = vsel %vm411, %v1396, 0
        %v1407 = vsel %vm513, %v1402, 0
        %1409 = vmatpush.bf16.msra.mxu0 0
        %1410 = vmatpush.bf16.msra.mxu0 0
        %1411 = vmatpush.bf16.msra.mxu0 0
        %1412 = vmatpush.bf16.msra.mxu0 0
        %1413 = vmatpush.bf16.msra.mxu0 0
        %1414 = vmatpush.bf16.msra.mxu0 0
        %1415 = vmatpush.bf16.msra.mxu0 0
        %1416 = vmatpush.bf16.msra.mxu0 %v1407
        %1417 = vmatmul.bf16.gmra.mxu0 %v1404
        %v1418 = vpop.f32.mrf.mxu0
        %v1419 = vadd.f32 0.0, %v1418
        %v1420 = vpop.f32.mrf.mxu0
        %1421 = vdwg.mxu0
        %v1423 = vunpack.c.l.b16 %v1299
        %v1424 = vpack.c.b16 %v1423, %v1423
        %1425 = vrot.lane.b32.xlu0 %v1424, 64
        %v1426 = vpop.permute.xlu0 %1425
        %v1428 = vsel %vm411, %v1397, 0
        %v1431 = vsel %vm513, %v1426, 0
        %1433 = vmatpush.bf16.msra.mxu0 0
        %1434 = vmatpush.bf16.msra.mxu0 0
        %1435 = vmatpush.bf16.msra.mxu0 0
        %1436 = vmatpush.bf16.msra.mxu0 0
        %1437 = vmatpush.bf16.msra.mxu0 0
        %1438 = vmatpush.bf16.msra.mxu0 0
        %1439 = vmatpush.bf16.msra.mxu0 0
        %1440 = vmatpush.bf16.msra.mxu0 %v1431
        %1441 = vmatmul.bf16.gmra.mxu0 %v1428
        %v1442 = vpop.f32.mrf.mxu0
        %v1443 = vadd.f32 0.0, %v1442
        %v1444 = vpop.f32.mrf.mxu0
        %1445 = vdwg.mxu0
        %v1447 = vunpack.c.l.b16 %v1294
        %v1448 = vpack.c.b16 %v1447, %v1447
        %1449 = vrot.lane.b32.xlu0 %v1448, 120
        %v1450 = vpop.permute.xlu0 %1449
        %1451 = vrot.lane.b32.xlu0 %v1302, 88
        %v1452 = vpop.permute.xlu0 %1451
        %v1454 = vsel %vm411, %v1450, 0
        %v1457 = vsel %vm411, %v1452, 0
        %1459 = vmatpush.bf16.xpose.msra.mxu0 0
        %1460 = vmatpush.bf16.xpose.msra.mxu0 0
        %1461 = vmatpush.bf16.xpose.msra.mxu0 0
        %1462 = vmatpush.bf16.xpose.msra.mxu0 0
        %1463 = vmatpush.bf16.xpose.msra.mxu0 0
        %1464 = vmatpush.bf16.xpose.msra.mxu0 0
        %1465 = vmatpush.bf16.xpose.msra.mxu0 0
        %1466 = vmatpush.bf16.xpose.msra.mxu0 %v1457
        %1467 = vmatmul.bf16.gmra.mxu0 %v1454
        %v1468 = vpop.f32.mrf.mxu0
        %v1469 = vadd.f32 0.0, %v1468
        %v1470 = vpop.f32.mrf.mxu0
        %1471 = vdwg.mxu0
        %v1473 = vunpack.c.l.b16 %v1295
        %v1474 = vpack.c.b16 %v1473, %v1473
        %1475 = vrot.lane.b32.xlu0 %v1474, 120
        %v1476 = vpop.permute.xlu0 %1475
        %1477 = vrot.lane.b32.xlu0 %v1326, 88
        %v1478 = vpop.permute.xlu0 %1477
        %v1480 = vsel %vm411, %v1476, 0
        %v1483 = vsel %vm411, %v1478, 0
        %1485 = vmatpush.bf16.xpose.msra.mxu0 0
        %1486 = vmatpush.bf16.xpose.msra.mxu0 0
        %1487 = vmatpush.bf16.xpose.msra.mxu0 0
        %1488 = vmatpush.bf16.xpose.msra.mxu0 0
        %1489 = vmatpush.bf16.xpose.msra.mxu0 0
        %1490 = vmatpush.bf16.xpose.msra.mxu0 0
        %1491 = vmatpush.bf16.xpose.msra.mxu0 0
        %1492 = vmatpush.bf16.xpose.msra.mxu0 %v1483
        %1493 = vmatmul.bf16.gmra.mxu0 %v1480
        %v1494 = vpop.f32.mrf.mxu0
        %v1495 = vadd.f32 0.0, %v1494
        %v1496 = vpop.f32.mrf.mxu0
        %1497 = vdwg.mxu0
        %v1498 = vsel %vm411, %v1469, -inf
        %1499 = vmax.xlane.f32.xlu0 %v1498
        %v1500 = vpop.xlane.xlu0 %1499
        %v1501 = vsel %vm411, %v1495, -inf
        %1502 = vmax.xlane.f32.xlu0 %v1501
        %v1503 = vpop.xlane.xlu0 %1502
        %v1504 = vsub.f32 %v1469, %v1500
        %v1505 = vsub.f32 %v1495, %v1503
        %v1506 = vmul.f32 %v1504, 1.442695
        %v1507 = vpow.pop %v1506
        %v1508 = vmul.f32 %v1505, 1.442695
        %v1509 = vpow.pop %v1508
        %v1510 = vsel %vm411, %v1507, 0.0
        %1511 = vadd.xlane.f32.xlu0 %v1510
        %v1512 = vpop.xlane.xlu0 %1511
        %v1513 = vsel %vm411, %v1509, 0.0
        %1514 = vadd.xlane.f32.xlu0 %v1513
        %v1515 = vpop.xlane.xlu0 %1514
        %v1516 = vrcp.pop %v1512
        %v1517 = vmul.f32 %v1512, %v1516
        %v1518 = vsub.f32 1.0, %v1517
        %v1519 = vmul.f32 %v1516, %v1518
        %v1520 = vadd.f32 %v1516, %v1519
        %vm1521 = vweird.f32 %v1512
        %vm1522 = vweird.f32 %v1516
        %vm1523 = vmor %vm1521, %vm1522
        %v1524 = vsel %vm1523, %v1516, %v1520
        %v1525 = vand.u32 2147483647, %v1512
        %vm1526 = vcmp.eq.f32.partialorder %v1525, 8.507059e+37
        %v1527 = vand.u32 %v1512, 2147483648
        %v1528 = vor.u32 1.1754944e-38, %v1527
        %v1529 = vsel %vm1526, %v1528, %v1524
        %v1530 = vrcp.pop %v1515
        %v1531 = vmul.f32 %v1515, %v1530
        %v1532 = vsub.f32 1.0, %v1531
        %v1533 = vmul.f32 %v1530, %v1532
        %v1534 = vadd.f32 %v1530, %v1533
        %vm1535 = vweird.f32 %v1515
        %vm1536 = vweird.f32 %v1530
        %vm1537 = vmor %vm1535, %vm1536
        %v1538 = vsel %vm1537, %v1530, %v1534
        %v1539 = vand.u32 2147483647, %v1515
        %vm1540 = vcmp.eq.f32.partialorder %v1539, 8.507059e+37
        %v1541 = vand.u32 %v1515, 2147483648
        %v1542 = vor.u32 1.1754944e-38, %v1541
        %v1543 = vsel %vm1540, %v1542, %v1538
        %v1544 = vmul.f32 %v1507, %v1529
        %v1545 = vmul.f32 %v1509, %v1543
        %v1546 = vpack.c.bf16 %v1544, %v1544
        %v1547 = vpack.c.bf16 %v1545, %v1545
        %1548 = vrot.lane.b32.xlu0 %v1400, 56
        %v1549 = vpop.permute.xlu0 %1548
        %v1551 = vsel %vm411, %v1546, 0
        %v1554 = vsel %vm513, %v1549, 0
        %1556 = vmatpush.bf16.msra.mxu0 0
        %1557 = vmatpush.bf16.msra.mxu0 0
        %1558 = vmatpush.bf16.msra.mxu0 0
        %1559 = vmatpush.bf16.msra.mxu0 0
        %1560 = vmatpush.bf16.msra.mxu0 0
        %1561 = vmatpush.bf16.msra.mxu0 0
        %1562 = vmatpush.bf16.msra.mxu0 0
        %1563 = vmatpush.bf16.msra.mxu0 %v1554
        %1564 = vmatmul.bf16.gmra.mxu0 %v1551
        %v1565 = vpop.f32.mrf.mxu0
        %v1566 = vadd.f32 0.0, %v1565
        %v1567 = vpop.f32.mrf.mxu0
        %1568 = vdwg.mxu0
        %1569 = vrot.lane.b32.xlu0 %v1424, 56
        %v1570 = vpop.permute.xlu0 %1569
        %v1572 = vsel %vm411, %v1547, 0
        %v1575 = vsel %vm513, %v1570, 0
        %1577 = vmatpush.bf16.msra.mxu0 0
        %1578 = vmatpush.bf16.msra.mxu0 0
        %1579 = vmatpush.bf16.msra.mxu0 0
        %1580 = vmatpush.bf16.msra.mxu0 0
        %1581 = vmatpush.bf16.msra.mxu0 0
        %1582 = vmatpush.bf16.msra.mxu0 0
        %1583 = vmatpush.bf16.msra.mxu0 0
        %1584 = vmatpush.bf16.msra.mxu0 %v1575
        %1585 = vmatmul.bf16.gmra.mxu0 %v1572
        %v1586 = vpop.f32.mrf.mxu0
        %v1587 = vadd.f32 0.0, %v1586
        %v1588 = vpop.f32.mrf.mxu0
        %1589 = vdwg.mxu0
        %1590 = vrot.lane.b32.xlu0 %v1448, 112
        %v1591 = vpop.permute.xlu0 %1590
        %1592 = vrot.lane.b32.xlu0 %v1302, 80
        %v1593 = vpop.permute.xlu0 %1592
        %v1595 = vsel %vm411, %v1591, 0
        %v1598 = vsel %vm411, %v1593, 0
        %1600 = vmatpush.bf16.xpose.msra.mxu0 0
        %1601 = vmatpush.bf16.xpose.msra.mxu0 0
        %1602 = vmatpush.bf16.xpose.msra.mxu0 0
        %1603 = vmatpush.bf16.xpose.msra.mxu0 0
        %1604 = vmatpush.bf16.xpose.msra.mxu0 0
        %1605 = vmatpush.bf16.xpose.msra.mxu0 0
        %1606 = vmatpush.bf16.xpose.msra.mxu0 0
        %1607 = vmatpush.bf16.xpose.msra.mxu0 %v1598
        %1608 = vmatmul.bf16.gmra.mxu0 %v1595
        %v1609 = vpop.f32.mrf.mxu0
        %v1610 = vadd.f32 0.0, %v1609
        %v1611 = vpop.f32.mrf.mxu0
        %1612 = vdwg.mxu0
        %1613 = vrot.lane.b32.xlu0 %v1474, 112
        %v1614 = vpop.permute.xlu0 %1613
        %1615 = vrot.lane.b32.xlu0 %v1326, 80
        %v1616 = vpop.permute.xlu0 %1615
        %v1618 = vsel %vm411, %v1614, 0
        %v1621 = vsel %vm411, %v1616, 0
        %1623 = vmatpush.bf16.xpose.msra.mxu0 0
        %1624 = vmatpush.bf16.xpose.msra.mxu0 0
        %1625 = vmatpush.bf16.xpose.msra.mxu0 0
        %1626 = vmatpush.bf16.xpose.msra.mxu0 0
        %1627 = vmatpush.bf16.xpose.msra.mxu0 0
        %1628 = vmatpush.bf16.xpose.msra.mxu0 0
        %1629 = vmatpush.bf16.xpose.msra.mxu0 0
        %1630 = vmatpush.bf16.xpose.msra.mxu0 %v1621
        %1631 = vmatmul.bf16.gmra.mxu0 %v1618
        %v1632 = vpop.f32.mrf.mxu0
        %v1633 = vadd.f32 0.0, %v1632
        %v1634 = vpop.f32.mrf.mxu0
        %1635 = vdwg.mxu0
        %v1636 = vsel %vm411, %v1610, -inf
        %1637 = vmax.xlane.f32.xlu0 %v1636
        %v1638 = vpop.xlane.xlu0 %1637
        %v1639 = vsel %vm411, %v1633, -inf
        %1640 = vmax.xlane.f32.xlu0 %v1639
        %v1641 = vpop.xlane.xlu0 %1640
        %v1642 = vsub.f32 %v1610, %v1638
        %v1643 = vsub.f32 %v1633, %v1641
        %v1644 = vmul.f32 %v1642, 1.442695
        %v1645 = vpow.pop %v1644
        %v1646 = vmul.f32 %v1643, 1.442695
        %v1647 = vpow.pop %v1646
        %v1648 = vsel %vm411, %v1645, 0.0
        %1649 = vadd.xlane.f32.xlu0 %v1648
        %v1650 = vpop.xlane.xlu0 %1649
        %v1651 = vsel %vm411, %v1647, 0.0
        %1652 = vadd.xlane.f32.xlu0 %v1651
        %v1653 = vpop.xlane.xlu0 %1652
        %v1654 = vrcp.pop %v1650
        %v1655 = vmul.f32 %v1650, %v1654
        %v1656 = vsub.f32 1.0, %v1655
        %v1657 = vmul.f32 %v1654, %v1656
        %v1658 = vadd.f32 %v1654, %v1657
        %vm1659 = vweird.f32 %v1650
        %vm1660 = vweird.f32 %v1654
        %vm1661 = vmor %vm1659, %vm1660
        %v1662 = vsel %vm1661, %v1654, %v1658
        %v1663 = vand.u32 2147483647, %v1650
        %vm1664 = vcmp.eq.f32.partialorder %v1663, 8.507059e+37
        %v1665 = vand.u32 %v1650, 2147483648
        %v1666 = vor.u32 1.1754944e-38, %v1665
        %v1667 = vsel %vm1664, %v1666, %v1662
        %v1668 = vrcp.pop %v1653
        %v1669 = vmul.f32 %v1653, %v1668
        %v1670 = vsub.f32 1.0, %v1669
        %v1671 = vmul.f32 %v1668, %v1670
        %v1672 = vadd.f32 %v1668, %v1671
        %vm1673 = vweird.f32 %v1653
        %vm1674 = vweird.f32 %v1668
        %vm1675 = vmor %vm1673, %vm1674
        %v1676 = vsel %vm1675, %v1668, %v1672
        %v1677 = vand.u32 2147483647, %v1653
        %vm1678 = vcmp.eq.f32.partialorder %v1677, 8.507059e+37
        %v1679 = vand.u32 %v1653, 2147483648
        %v1680 = vor.u32 1.1754944e-38, %v1679
        %v1681 = vsel %vm1678, %v1680, %v1676
        %v1682 = vmul.f32 %v1645, %v1667
        %v1683 = vmul.f32 %v1647, %v1681
        %v1684 = vpack.c.bf16 %v1682, %v1682
        %v1685 = vpack.c.bf16 %v1683, %v1683
        %1686 = vrot.lane.b32.xlu0 %v1400, 48
        %v1687 = vpop.permute.xlu0 %1686
        %v1689 = vsel %vm411, %v1684, 0
        %v1692 = vsel %vm513, %v1687, 0
        %1694 = vmatpush.bf16.msra.mxu0 0
        %1695 = vmatpush.bf16.msra.mxu0 0
        %1696 = vmatpush.bf16.msra.mxu0 0
        %1697 = vmatpush.bf16.msra.mxu0 0
        %1698 = vmatpush.bf16.msra.mxu0 0
        %1699 = vmatpush.bf16.msra.mxu0 0
        %1700 = vmatpush.bf16.msra.mxu0 0
        %1701 = vmatpush.bf16.msra.mxu0 %v1692
        %1702 = vmatmul.bf16.gmra.mxu0 %v1689
        %v1703 = vpop.f32.mrf.mxu0
        %v1704 = vadd.f32 0.0, %v1703
        %v1705 = vpop.f32.mrf.mxu0
        %1706 = vdwg.mxu0
        %1707 = vrot.lane.b32.xlu0 %v1424, 48
        %v1708 = vpop.permute.xlu0 %1707
        %v1710 = vsel %vm411, %v1685, 0
        %v1713 = vsel %vm513, %v1708, 0
        %1715 = vmatpush.bf16.msra.mxu0 0
        %1716 = vmatpush.bf16.msra.mxu0 0
        %1717 = vmatpush.bf16.msra.mxu0 0
        %1718 = vmatpush.bf16.msra.mxu0 0
        %1719 = vmatpush.bf16.msra.mxu0 0
        %1720 = vmatpush.bf16.msra.mxu0 0
        %1721 = vmatpush.bf16.msra.mxu0 0
        %1722 = vmatpush.bf16.msra.mxu0 %v1713
        %1723 = vmatmul.bf16.gmra.mxu0 %v1710
        %v1724 = vpop.f32.mrf.mxu0
        %v1725 = vadd.f32 0.0, %v1724
        %v1726 = vpop.f32.mrf.mxu0
        %1727 = vdwg.mxu0
        %1728 = vrot.lane.b32.xlu0 %v1448, 104
        %v1729 = vpop.permute.xlu0 %1728
        %1730 = vrot.lane.b32.xlu0 %v1302, 72
        %v1731 = vpop.permute.xlu0 %1730
        %v1733 = vsel %vm411, %v1729, 0
        %v1736 = vsel %vm411, %v1731, 0
        %1738 = vmatpush.bf16.xpose.msra.mxu0 0
        %1739 = vmatpush.bf16.xpose.msra.mxu0 0
        %1740 = vmatpush.bf16.xpose.msra.mxu0 0
        %1741 = vmatpush.bf16.xpose.msra.mxu0 0
        %1742 = vmatpush.bf16.xpose.msra.mxu0 0
        %1743 = vmatpush.bf16.xpose.msra.mxu0 0
        %1744 = vmatpush.bf16.xpose.msra.mxu0 0
        %1745 = vmatpush.bf16.xpose.msra.mxu0 %v1736
        %1746 = vmatmul.bf16.gmra.mxu0 %v1733
        %v1747 = vpop.f32.mrf.mxu0
        %v1748 = vadd.f32 0.0, %v1747
        %v1749 = vpop.f32.mrf.mxu0
        %1750 = vdwg.mxu0
        %1751 = vrot.lane.b32.xlu0 %v1474, 104
        %v1752 = vpop.permute.xlu0 %1751
        %1753 = vrot.lane.b32.xlu0 %v1326, 72
        %v1754 = vpop.permute.xlu0 %1753
        %v1756 = vsel %vm411, %v1752, 0
        %v1759 = vsel %vm411, %v1754, 0
        %1761 = vmatpush.bf16.xpose.msra.mxu0 0
        %1762 = vmatpush.bf16.xpose.msra.mxu0 0
        %1763 = vmatpush.bf16.xpose.msra.mxu0 0
        %1764 = vmatpush.bf16.xpose.msra.mxu0 0
        %1765 = vmatpush.bf16.xpose.msra.mxu0 0
        %1766 = vmatpush.bf16.xpose.msra.mxu0 0
        %1767 = vmatpush.bf16.xpose.msra.mxu0 0
        %1768 = vmatpush.bf16.xpose.msra.mxu0 %v1759
        %1769 = vmatmul.bf16.gmra.mxu0 %v1756
        %v1770 = vpop.f32.mrf.mxu0
        %v1771 = vadd.f32 0.0, %v1770
        %v1772 = vpop.f32.mrf.mxu0
        %1773 = vdwg.mxu0
        %v1774 = vsel %vm411, %v1748, -inf
        %1775 = vmax.xlane.f32.xlu0 %v1774
        %v1776 = vpop.xlane.xlu0 %1775
        %v1777 = vsel %vm411, %v1771, -inf
        %1778 = vmax.xlane.f32.xlu0 %v1777
        %v1779 = vpop.xlane.xlu0 %1778
        %v1780 = vsub.f32 %v1748, %v1776
        %v1781 = vsub.f32 %v1771, %v1779
        %v1782 = vmul.f32 %v1780, 1.442695
        %v1783 = vpow.pop %v1782
        %v1784 = vmul.f32 %v1781, 1.442695
        %v1785 = vpow.pop %v1784
        %v1786 = vsel %vm411, %v1783, 0.0
        %1787 = vadd.xlane.f32.xlu0 %v1786
        %v1788 = vpop.xlane.xlu0 %1787
        %v1789 = vsel %vm411, %v1785, 0.0
        %1790 = vadd.xlane.f32.xlu0 %v1789
        %v1791 = vpop.xlane.xlu0 %1790
        %v1792 = vrcp.pop %v1788
        %v1793 = vmul.f32 %v1788, %v1792
        %v1794 = vsub.f32 1.0, %v1793
        %v1795 = vmul.f32 %v1792, %v1794
        %v1796 = vadd.f32 %v1792, %v1795
        %vm1797 = vweird.f32 %v1788
        %vm1798 = vweird.f32 %v1792
        %vm1799 = vmor %vm1797, %vm1798
        %v1800 = vsel %vm1799, %v1792, %v1796
        %v1801 = vand.u32 2147483647, %v1788
        %vm1802 = vcmp.eq.f32.partialorder %v1801, 8.507059e+37
        %v1803 = vand.u32 %v1788, 2147483648
        %v1804 = vor.u32 1.1754944e-38, %v1803
        %v1805 = vsel %vm1802, %v1804, %v1800
        %v1806 = vrcp.pop %v1791
        %v1807 = vmul.f32 %v1791, %v1806
        %v1808 = vsub.f32 1.0, %v1807
        %v1809 = vmul.f32 %v1806, %v1808
        %v1810 = vadd.f32 %v1806, %v1809
        %vm1811 = vweird.f32 %v1791
        %vm1812 = vweird.f32 %v1806
        %vm1813 = vmor %vm1811, %vm1812
        %v1814 = vsel %vm1813, %v1806, %v1810
        %v1815 = vand.u32 2147483647, %v1791
        %vm1816 = vcmp.eq.f32.partialorder %v1815, 8.507059e+37
        %v1817 = vand.u32 %v1791, 2147483648
        %v1818 = vor.u32 1.1754944e-38, %v1817
        %v1819 = vsel %vm1816, %v1818, %v1814
        %v1820 = vmul.f32 %v1783, %v1805
        %v1821 = vmul.f32 %v1785, %v1819
        %v1822 = vpack.c.bf16 %v1820, %v1820
        %v1823 = vpack.c.bf16 %v1821, %v1821
        %1824 = vrot.lane.b32.xlu0 %v1400, 40
        %v1825 = vpop.permute.xlu0 %1824
        %v1827 = vsel %vm411, %v1822, 0
        %v1830 = vsel %vm513, %v1825, 0
        %1832 = vmatpush.bf16.msra.mxu0 0
        %1833 = vmatpush.bf16.msra.mxu0 0
        %1834 = vmatpush.bf16.msra.mxu0 0
        %1835 = vmatpush.bf16.msra.mxu0 0
        %1836 = vmatpush.bf16.msra.mxu0 0
        %1837 = vmatpush.bf16.msra.mxu0 0
        %1838 = vmatpush.bf16.msra.mxu0 0
        %1839 = vmatpush.bf16.msra.mxu0 %v1830
        %1840 = vmatmul.bf16.gmra.mxu0 %v1827
        %v1841 = vpop.f32.mrf.mxu0
        %v1842 = vadd.f32 0.0, %v1841
        %v1843 = vpop.f32.mrf.mxu0
        %1844 = vdwg.mxu0
        %1845 = vrot.lane.b32.xlu0 %v1424, 40
        %v1846 = vpop.permute.xlu0 %1845
        %v1848 = vsel %vm411, %v1823, 0
        %v1851 = vsel %vm513, %v1846, 0
        %1853 = vmatpush.bf16.msra.mxu0 0
        %1854 = vmatpush.bf16.msra.mxu0 0
        %1855 = vmatpush.bf16.msra.mxu0 0
        %1856 = vmatpush.bf16.msra.mxu0 0
        %1857 = vmatpush.bf16.msra.mxu0 0
        %1858 = vmatpush.bf16.msra.mxu0 0
        %1859 = vmatpush.bf16.msra.mxu0 0
        %1860 = vmatpush.bf16.msra.mxu0 %v1851
        %1861 = vmatmul.bf16.gmra.mxu0 %v1848
        %v1862 = vpop.f32.mrf.mxu0
        %v1863 = vadd.f32 0.0, %v1862
        %v1864 = vpop.f32.mrf.mxu0
        %1865 = vdwg.mxu0
        %1868 = vrot.lane.b32.xlu0 %v1566, 8
        %v1869 = vpop.permute.xlu0 %1868
        %1870 = vrot.lane.b32.xlu0 %v1587, 8
        %v1871 = vpop.permute.xlu0 %1870
        %1876 = vrot.lane.b32.xlu0 %v1704, 16
        %v1877 = vpop.permute.xlu0 %1876
        %1878 = vrot.lane.b32.xlu0 %v1725, 16
        %v1879 = vpop.permute.xlu0 %1878
        %1884 = vrot.lane.b32.xlu0 %v1842, 24
        %v1885 = vpop.permute.xlu0 %1884
        %1886 = vrot.lane.b32.xlu0 %v1863, 24
        %v1887 = vpop.permute.xlu0 %1886
        %v1890 = vsel %vm411, %v1419, %v1869
        %v1891 = vsel %vm411, %v1443, %v1871
        %v1892 = vsel %vm1000, %v1890, %v1877
        %v1893 = vsel %vm1000, %v1891, %v1879
        %v1894 = vsel %vm1003, %v1892, %v1885
        %v1895 = vsel %vm1003, %v1893, %v1887
        %v1896 = vpack.c.bf16 %v1895, %v1894
        %v1901 = vunpack.c.l.b16 %v1176
        %v1902 = vunpack.c.l.b16 %v1177
        %v1903 = vunpack.c.l.b16 %v1178
        %v1904 = vunpack.c.l.b16 %v1179
        %v1905 = vpack.c.b16 %v1902, %v1901
        %v1906 = vpack.c.b16 %v1904, %v1903
        %v1910 = vsel %vm295, %v1896, 0
        %1912 = vmatpush.bf16.msra.mxu0 0
        %1913 = vmatpush.bf16.msra.mxu0 0
        %1914 = vmatpush.bf16.msra.mxu0 0
        %1915 = vmatpush.bf16.msra.mxu0 0
        %1916 = vmatpush.bf16.msra.mxu0 0
        %1917 = vmatpush.bf16.msra.mxu0 0
        %1918 = vmatpush.bf16.msra.mxu0 %v1906
        %1919 = vmatpush.bf16.msra.mxu0 %v1905
        %1920 = vmatmul.bf16.gmra.mxu0 %v1910
        %v1921 = vpop.f32.mrf.mxu0
        %v1922 = vadd.f32 0.0, %v1921
        %v1923 = vpop.f32.mrf.mxu0
        %v1924 = vadd.f32 0.0, %v1923
        %1925 = vdwg.mxu0
        %v1926 = vadd.f32 %v1168, %v1922
        %v1927 = vadd.f32 %v1169, %v1924
        %v1928 = vperm.slane %v1195, 3
        %v1929 = vadd.f32 %v1926, %v1928
        %v1930 = vadd.f32 %v1927, %v1928
        %v1931 = vsel %vm295, %v1929, 0.0
        %1932 = vadd.xlane.f32.xlu0 %v1931
        %v1933 = vpop.xlane.xlu0 %1932
        %v1934 = vsel %vm295, %v1930, 0.0
        %1935 = vadd.xlane.f32.xlu0 %v1934
        %v1936 = vpop.xlane.xlu0 %1935
        %v1937 = vmul.f32 %v1933, %v308
        %v1938 = vmul.f32 %v1936, %v308
        %v1939 = vsub.f32 %v1929, %v1937
        %v1940 = vsub.f32 %v1930, %v1938
        %v1941 = vmul.f32 %v1939, %v1939
        %v1942 = vmul.f32 %v1940, %v1940
        %v1943 = vsel %vm295, %v1941, 0.0
        %1944 = vadd.xlane.f32.xlu0 %v1943
        %v1945 = vpop.xlane.xlu0 %1944
        %v1946 = vsel %vm295, %v1942, 0.0
        %1947 = vadd.xlane.f32.xlu0 %v1946
        %v1948 = vpop.xlane.xlu0 %1947
        %v1949 = vmul.f32 %v1945, %v308
        %v1950 = vmul.f32 %v1948, %v308
        %v1951 = vadd.f32 %v1949, 1e-05
        %v1952 = vadd.f32 %v1950, 1e-05
        %v1953 = vrsqrt.pop %v1951
        %v1954 = vmul.f32 %v1953, %v1951
        %v1955 = vmul.f32 %v1954, %v1953
        %v1956 = vmul.f32 0.5, %v1955
        %v1957 = vsub.f32 1.5, %v1956
        %v1958 = vmul.f32 %v1953, %v1957
        %vm1959 = vweird.f32 %v1951
        %vm1960 = vweird.f32 %v1953
        %vm1961 = vmor %vm1959, %vm1960
        %v1962 = vsel %vm1961, %v1953, %v1958
        %v1963 = vrsqrt.pop %v1952
        %v1964 = vmul.f32 %v1963, %v1952
        %v1965 = vmul.f32 %v1964, %v1963
        %v1966 = vmul.f32 0.5, %v1965
        %v1967 = vsub.f32 1.5, %v1966
        %v1968 = vmul.f32 %v1963, %v1967
        %vm1969 = vweird.f32 %v1952
        %vm1970 = vweird.f32 %v1963
        %vm1971 = vmor %vm1969, %vm1970
        %v1972 = vsel %vm1971, %v1963, %v1968
        %v1973 = vmul.f32 %v1939, %v1962
        %v1974 = vmul.f32 %v1940, %v1972
        %v1975 = vperm.slane %v1195, 6
        %v1976 = vmul.f32 %v1973, %v1975
        %v1977 = vmul.f32 %v1974, %v1975
        %v1978 = vperm.slane %v1195, 7
        %v1979 = vadd.f32 %v1976, %v1978
        %v1980 = vadd.f32 %v1977, %v1978
        %v1981 = vpack.c.bf16 %v1980, %v1979
        %v1982 = vperm.slane %v1196, 1
        %v1987 = vunpack.c.l.b16 %v1181
        %v1988 = vunpack.c.l.b16 %v1182
        %v1989 = vunpack.c.l.b16 %v1183
        %v1990 = vunpack.c.l.b16 %v1184
        %v1991 = vpack.c.b16 %v1988, %v1987
        %v1992 = vpack.c.b16 %v1990, %v1989
        %v1996 = vsel %vm295, %v1981, 0
        %1998 = vmatpush.bf16.msra.mxu0 0
        %1999 = vmatpush.bf16.msra.mxu0 0
        %2000 = vmatpush.bf16.msra.mxu0 0
        %2001 = vmatpush.bf16.msra.mxu0 0
        %2002 = vmatpush.bf16.msra.mxu0 0
        %2003 = vmatpush.bf16.msra.mxu0 0
        %2004 = vmatpush.bf16.msra.mxu0 %v1992
        %2005 = vmatpush.bf16.msra.mxu0 %v1991
        %2006 = vmatmul.bf16.gmra.mxu0 %v1996
        %v2007 = vpop.f32.mrf.mxu0
        %v2008 = vadd.f32 %v1982, %v2007
        %v2009 = vpop.f32.mrf.mxu0
        %v2010 = vadd.f32 %v1982, %v2009
        %2011 = vdwg.mxu0
        %v2012 = vmax.f32 %v2008, 0.0
        %v2013 = vmax.f32 %v2010, 0.0
        %v2014 = vpack.c.bf16 %v2013, %v2012
        %v2015 = vperm.slane %v1196, 0
        %v2024 = vunpack.c.l.b16 %v1186
        %v2025 = vunpack.c.l.b16 %v1187
        %v2026 = vunpack.c.l.b16 %v1188
        %v2027 = vunpack.c.l.b16 %v1189
        %v2028 = vunpack.c.l.b16 %v1190
        %v2029 = vunpack.c.l.b16 %v1191
        %v2030 = vunpack.c.l.b16 %v1192
        %v2031 = vunpack.c.l.b16 %v1193
        %v2032 = vpack.c.b16 %v2025, %v2024
        %v2033 = vpack.c.b16 %v2027, %v2026
        %v2034 = vpack.c.b16 %v2029, %v2028
        %v2035 = vpack.c.b16 %v2031, %v2030
        %v2041 = vsel %vm1150, %v2014, 0
        %2043 = vmatpush.bf16.msra.mxu0 0
        %2044 = vmatpush.bf16.msra.mxu0 0
        %2045 = vmatpush.bf16.msra.mxu0 0
        %2046 = vmatpush.bf16.msra.mxu0 0
        %2047 = vmatpush.bf16.msra.mxu0 %v2035
        %2048 = vmatpush.bf16.msra.mxu0 %v2034
        %2049 = vmatpush.bf16.msra.mxu0 %v2033
        %2050 = vmatpush.bf16.msra.mxu0 %v2032
        %2051 = vmatmul.bf16.gmra.mxu0 %v2041
        %v2052 = vpop.f32.mrf.mxu0
        %v2053 = vadd.f32 %v2015, %v2052
        %v2054 = vpop.f32.mrf.mxu0
        %v2055 = vadd.f32 %v2015, %v2054
        %2056 = vdwg.mxu0
        %v2057 = vadd.f32 %v1929, %v2053
        %v2058 = vadd.f32 %v1930, %v2055
        %2059 = vst.msk [vmem:[%s262] sm:$0xff] %vm295, %v2057
        %2060 = vst.msk [vmem:[%s262 + $0x8] sm:$0xff] %vm295, %v2058
        %s2061 = sand.u32 %s160, 1
        %s2062 = scalar_lea.sflag [#allocation4], %s2061
        %s2063 = sand.u32 %s160, 1
        %s2064 = smul.addr %s2063, 16
        %s2065 = scalar_lea.vmem [#allocation5], %s2064
        // Predicated region
        $region49: #{tpu_custom_call.1} parent=43 // pred_check
          %p2066 = pneg %p170
        $region50: #{tpu_custom_call.1} parent=43 // pred_check_branch
          %2068 = sbr.rel (%p2066) target = $region52
        $region51: #{tpu_custom_call.1} parent=43 // pred_region
          %s2069 = smul.u32 2, %s21
          %2071 = vsyncadd %s2062, 0
          %s2072 = smul.addr %s2069, 8
          %s2073 = scalar_lea.hbm %s6, %s2072
          %s2074 = sshll.u32 %s2065, 4
          %s2075 = int_to_ptr.vmem [resolvable:$true] %s2074
          %s2076 = sshll.u32 %s2073, 4
          %s2077 = int_to_ptr.hbm [resolvable:$true] %s2076
          %2082 = dma.vmem_to_hbm [thread:$0]  %s2075, 256, %s2077, %s2062, 128, 128, 8
        $region52: #{tpu_custom_call.1} parent=43 // pred_fallthru
          _
      $region44: #{tpu_custom_call.1} parent=5 // pred_fallthru
        _
      %p2083 = scmp.le.s32.totalorder 2, %s16
      // Predicated region
      $region53: #{tpu_custom_call.1} parent=5 // pred_check
        %p2084 = pneg %p2083
      $region54: #{tpu_custom_call.1} parent=5 // pred_check_branch
        %2086 = sbr.rel (%p2084) target = $region56
      $region55: #{tpu_custom_call.1} parent=5 // pred_region
        %s2087 = ssub.s32 %s16, 2
        // Predicated region
        $region57: #{tpu_custom_call.1} parent=55 // pred_check
          %p2088 = pneg %p176
        $region58: #{tpu_custom_call.1} parent=55 // pred_check_branch
          %2090 = sbr.rel (%p2088) target = $region60
        $region59: #{tpu_custom_call.1} parent=55 // pred_region
          %s2091 = sand.u32 %s161, 1
          %s2092 = scalar_lea.sflag [#allocation4], %s2091
          %s2093 = sand.u32 %s161, 1
          %s2094 = smul.addr %s2093, 16
          %s2095 = scalar_lea.vmem [#allocation5], %s2094
          %2097 = dma.done %s2092, 256
        $region60: #{tpu_custom_call.1} parent=55 // pred_fallthru
          _
      $region56: #{tpu_custom_call.1} parent=5 // pred_fallthru
        _
    $region6: #{tpu_custom_call.1} parent=1 // loop_footer
      %s20 = sadd.s32 1, %s16
    $region7: #{tpu_custom_call.1} parent=1 // loop_footer_branch
      %15 = sbr.rel target = $region3
    $region8: #{tpu_custom_call.1} parent=1 // loop_exit
      _
    %2098 = vsyncpa [#allocation3], 1
    %s2099 = scalar_lea.sflag [#allocation3], 1
    %2100 = vsyncpa %s2099, 1
    %2101 = vsyncpa [#allocation4], 1
    %s2102 = scalar_lea.sflag [#allocation4], 1
    %2103 = vsyncpa %s2102, 1

</llo_original>
